<compile_context>
chip_gen: v7x
topology: tpu7x:2x2x1
jax: 0.10.0
libtpu: 0.0.40
codegen_flags: <defaults>
</compile_context>

<pallas_src>
import math
import functools

import jax
import jax.numpy as jnp
import numpy as np
from jax.experimental import pallas as pl
from jax.experimental.pallas import tpu as pltpu

LN_EPS = 1e-5

# Packed per-layer parameter order consumed by the kernel.
PARAM_ORDER = ["wqkv", "bqkv", "wo", "w1", "b1", "w2", "vecs"]


def _layer_norm(x, g, b):
    mu = jnp.mean(x, axis=-1, keepdims=True)
    var = jnp.mean(jnp.square(x - mu), axis=-1, keepdims=True)
    return (x - mu) * jax.lax.rsqrt(var + LN_EPS) * g + b


def decoder_stack_kernel(
    x_ref, wqkv_ref, bqkv_ref, wo_ref, w1_ref, b1_ref, w2_ref, vec_ref,
    out_ref,
    *, num_heads, head_dim, batch, seq,
):
    layer = pl.program_id(1)

    # Constant index_map over the layer axis -> out_ref is VMEM-resident across
    # all layers of this batch tile and doubles as the f32 hidden-state carry.
    @pl.when(layer == 0)
    def _():
        out_ref[...] = x_ref[...]

    x = out_ref[...]                                  # [M, H] f32 carry
    M, H = x.shape
    scale = 1.0 / math.sqrt(head_dim)

    # Packed per-layer vectors: rows = ln1_g, ln1_b, ln2_g, ln2_b, bo, b2.
    vec = vec_ref[...]
    ln1_g, ln1_b = vec[0:1, :], vec[1:2, :]
    ln2_g, ln2_b = vec[2:3, :], vec[3:4, :]
    bo, b2 = vec[4:5, :], vec[5:6, :]

    # Causal mask built in-kernel (iota+compare is cheap VPU/scalar filler
    # hidden under the MXU; no resident S*S*4B VMEM block, no DMA).
    row = jax.lax.broadcasted_iota(jnp.int32, (seq, seq), 0)
    col = jax.lax.broadcasted_iota(jnp.int32, (seq, seq), 1)
    causal = jnp.where(row >= col, 0.0, -1e30).astype(jnp.float32)[None]  # [1,S,S]

    # ---------------- self-attention block (pre-LN) ----------------
    residual = x
    h = _layer_norm(x, ln1_g, ln1_b)
    hf = h.astype(jnp.bfloat16)                       # bf16 MXU operand

    # Fused QKV: one N=3H bf16 x bf16 matmul with f32 accumulation.
    qkv = jnp.dot(hf, wqkv_ref[...],
                  preferred_element_type=jnp.float32) + bqkv_ref[...]
    # Cast to bf16 ONCE; no per-head casts inside the loop.
    q = (qkv[:, 0 * H:1 * H] * scale).astype(jnp.bfloat16)
    k = qkv[:, 1 * H:2 * H].astype(jnp.bfloat16)
    v = qkv[:, 2 * H:3 * H].astype(jnp.bfloat16)

    # Per-head attention; head contexts are concatenated in registers and the
    # output projection is ONE full-width [M,H] x [H,H] matmul.
    # TODO(synk): at production head counts fold heads onto the grid (or a
    # fori_loop) and tile the KV axis flash-style instead of this unroll.
    ctx_heads = []
    for hd_i in range(num_heads):
        sl = slice(hd_i * head_dim, (hd_i + 1) * head_dim)
        qh = q[:, sl].reshape(batch, seq, head_dim)
        kh = k[:, sl].reshape(batch, seq, head_dim)
        vh = v[:, sl].reshape(batch, seq, head_dim)
        s = jnp.einsum("bqd,bkd->bqk", qh, kh,
                       preferred_element_type=jnp.float32) + causal
        m = jnp.max(s, axis=-1, keepdims=True)
        p = jnp.exp(s - m)
        inv = pl.reciprocal(jnp.sum(p, axis=-1, keepdims=True), approx=True)
        # Deferred normalization: scale the [b,S,head_dim] context instead of
        # the [b,S,S] probabilities (S*head_dim VPU mul instead of S^2).
        ctx_h = jnp.einsum("bqk,bkd->bqd", p.astype(jnp.bfloat16), vh,
                           preferred_element_type=jnp.float32) * inv
        ctx_heads.append(ctx_h.reshape(M, head_dim).astype(jnp.bfloat16))

    ctx = jnp.concatenate(ctx_heads, axis=-1)         # [M, H] bf16, lane-dense
    attn = jnp.dot(ctx, wo_ref[...],
                   preferred_element_type=jnp.float32) + bo
    x = residual + attn

    # ---------------- feed-forward block (pre-LN, ReLU) ----------------
    residual = x
    h = _layer_norm(x, ln2_g, ln2_b)
    f = jnp.dot(h.astype(jnp.bfloat16), w1_ref[...],
                preferred_element_type=jnp.float32) + b1_ref[...]
    f = jnp.maximum(f, 0.0)
    f = jnp.dot(f.astype(jnp.bfloat16), w2_ref[...],
                preferred_element_type=jnp.float32) + b2
    x = residual + f

    out_ref[...] = x


def _vmem_limit_bytes(tb, S, H, F):
    """Size the scoped-VMEM limit from the actually-resident buffers."""
    per_layer_w = (H * 3 * H + H * H + H * F + F * H) * 2    # bf16 matmul weights
    per_layer_v = (3 * H + F + 6 * H) * 4                    # packed f32 vectors
    resident = 2 * (per_layer_w + per_layer_v)               # double-buffered
    m = tb * S
    resident += 3 * m * H * 4                                # x (2 bufs) + carry
    act = m * (6 * H + 2 * F + 4 * H) * 4                    # activation headroom
    return int(min(max(resident + act + (4 << 20), 32 << 20), 112 << 20))


def decoder_stacked_forward(x, params, num_heads):
    """Runs the full layer stack in one pallas_call (grid = batch_tiles x layers)."""
    B, S, H = x.shape
    L = params["wqkv"].shape[0]
    F = params["w1"].shape[-1]
    head_dim = H // num_heads
    assert num_heads * head_dim == H, "hidden must be divisible by num_heads"

    # Batch-tile "parallel" axis: 2 tiles when possible (v7x has 2 TensorCores).
    nbt = 2 if (B >= 2 and B % 2 == 0) else 1
    tb = B // nbt
    m_tile = tb * S

    # Lane-dense 2-D hidden carry; reshape to [B,S,H] only outside the kernel.
    x2 = x.reshape(B * S, H).astype(jnp.float32)
    param_list = [params[n] for n in PARAM_ORDER]

    in_specs = [pl.BlockSpec((m_tile, H), lambda b, l: (b, 0))]        # hidden
    in_specs += [
        pl.BlockSpec((None,) + p.shape[1:], lambda b, l: (l, 0, 0))    # per-layer
        for p in param_list
    ]

    kernel = functools.partial(
        decoder_stack_kernel, num_heads=num_heads, head_dim=head_dim,
        batch=tb, seq=S)

    out = pl.pallas_call(
        kernel,
        out_shape=jax.ShapeDtypeStruct((B * S, H), jnp.float32),
        grid_spec=pltpu.PrefetchScalarGridSpec(
            num_scalar_prefetch=0,
            grid=(nbt, L),
            in_specs=in_specs,
            out_specs=pl.BlockSpec((m_tile, H), lambda b, l: (b, 0)),
        ),
        compiler_params=pltpu.CompilerParams(
            dimension_semantics=("parallel", "arbitrary"),
            vmem_limit_bytes=_vmem_limit_bytes(tb, S, H, F)),
    )(x2, *param_list)
    return out.reshape(B, S, H)


# ---------------------------------------------------------------------------
# Deterministic parameter construction + pure-JAX reference
# ---------------------------------------------------------------------------
def make_params(key, num_layers, hidden, ffn):
    L, H, F = num_layers, hidden, ffn
    ks = jax.random.split(key, 12)
    bf16, f32 = jnp.bfloat16, jnp.float32

    def rnd(k, shape, dtype, s=0.02):
        return (s * jax.random.normal(k, shape)).astype(dtype)

    wq = rnd(ks[0], (L, H, H), bf16); bq = rnd(ks[1], (L, 1, H), f32)
    wk = rnd(ks[2], (L, H, H), bf16); bk = rnd(ks[3], (L, 1, H), f32)
    wv = rnd(ks[4], (L, H, H), bf16); bv = rnd(ks[5], (L, 1, H), f32)
    wo = rnd(ks[6], (L, H, H), bf16); bo = rnd(ks[7], (L, 1, H), f32)
    w1 = rnd(ks[8], (L, H, F), bf16); b1 = rnd(ks[9], (L, 1, F), f32)
    w2 = rnd(ks[10], (L, F, H), bf16); b2 = rnd(ks[11], (L, 1, H), f32)
    ln1_g = jnp.ones((L, 1, H), f32); ln1_b = jnp.zeros((L, 1, H), f32)
    ln2_g = jnp.ones((L, 1, H), f32); ln2_b = jnp.zeros((L, 1, H), f32)

    # Fused / packed layout consumed by the kernel:
    #   wqkv (L,H,3H) bf16, bqkv (L,1,3H) f32,
    #   vecs (L,6,H) f32 rows = [ln1_g, ln1_b, ln2_g, ln2_b, bo, b2].
    return dict(
        wqkv=jnp.concatenate([wq, wk, wv], axis=-1),
        bqkv=jnp.concatenate([bq, bk, bv], axis=-1),
        wo=wo, w1=w1, b1=b1, w2=w2,
        vecs=jnp.concatenate([ln1_g, ln1_b, ln2_g, ln2_b, bo, b2], axis=1),
    )


def reference_forward(x, params, num_heads):
    """Pure-JAX reference mirroring the kernel's mixed-precision policy
    (bf16 matmul operands, f32 accumulation, f32 elementwise).  Uses exact
    softmax; the 5e-3 tolerance intentionally covers the kernel's approx-EUP
    reciprocal."""
    L = params["wqkv"].shape[0]
    B, S, H = x.shape
    hd = H // num_heads
    bf16 = jnp.bfloat16
    row = np.arange(S)[:, None]
    col = np.arange(S)[None, :]
    causal = jnp.asarray(np.where(row >= col, 0.0, -1e30), jnp.float32)

    def mm(a, w):   # bf16 x bf16 -> f32
        return jnp.dot(a.astype(bf16), w, preferred_element_type=jnp.float32)

    h = x.astype(jnp.float32)
    for l in range(L):
        vec = params["vecs"][l]
        ln1_g, ln1_b = vec[0][None], vec[1][None]
        ln2_g, ln2_b = vec[2][None], vec[3][None]
        bo, b2 = vec[4][None], vec[5][None]

        res = h
        t = _layer_norm(h, ln1_g, ln1_b).reshape(B * S, H)
        qkv = mm(t, params["wqkv"][l]) + params["bqkv"][l]
        q = (qkv[:, :H] * (1.0 / math.sqrt(hd))).reshape(B, S, num_heads, hd)
        k = qkv[:, H:2 * H].reshape(B, S, num_heads, hd)
        v = qkv[:, 2 * H:].reshape(B, S, num_heads, hd)
        s = jnp.einsum("bqnd,bknd->bnqk", q.astype(bf16), k.astype(bf16),
                       preferred_element_type=jnp.float32) + causal
        p = jax.nn.softmax(s, axis=-1)
        ctx = jnp.einsum("bnqk,bknd->bqnd", p.astype(bf16), v.astype(bf16),
                         preferred_element_type=jnp.float32).reshape(B * S, H)
        h = res + (mm(ctx, params["wo"][l]) + bo).reshape(B, S, H)

        res = h
        t = _layer_norm(h, ln2_g, ln2_b)
        f = jnp.maximum(
            mm(t.reshape(B * S, H), params["w1"][l]) + params["b1"][l], 0.0)
        h = res + (mm(f, params["w2"][l]) + b2).reshape(B, S, H)
    return h


if __name__ == "__main__":
    # Small, forward-consistent shapes.
    B, S, H = 2, 8, 32          # batch, seq, hidden
    NUM_HEADS = 4
    FFN = 4 * H                 # 128
    NUM_LAYERS = 2

    key = jax.random.PRNGKey(0)
    k_x, k_p = jax.random.split(key)
    x = jax.random.normal(k_x, (B, S, H), jnp.float32)
    params = make_params(k_p, NUM_LAYERS, H, FFN)

    # TODO(synk): kv_cache_to_device / .cuda() in __init__ are device-placement
    # side effects with no Pallas equivalent (prefill with empty cache assumed).

    out = jax.block_until_ready(decoder_stacked_forward(x, params, NUM_HEADS))
    ref = jax.block_until_ready(reference_forward(x, params, NUM_HEADS))
    np.testing.assert_allclose(np.asarray(out), np.asarray(ref),
                               rtol=5e-3, atol=5e-3)

    print("KERNEL_OK")
</pallas_src>

<mosaic_0001>
module attributes {stable_mosaic.version = 11 : i64} {
  func.func @decoder_stack_kernel(%arg0: i32, %arg1: i32, %arg2: memref<8x32xf32, #tpu.memory_space<vmem>>, %arg3: memref<1x32x96xbf16, #tpu.memory_space<vmem>>, %arg4: memref<1x1x96xf32, #tpu.memory_space<vmem>>, %arg5: memref<1x32x32xbf16, #tpu.memory_space<vmem>>, %arg6: memref<1x32x128xbf16, #tpu.memory_space<vmem>>, %arg7: memref<1x1x128xf32, #tpu.memory_space<vmem>>, %arg8: memref<1x128x32xbf16, #tpu.memory_space<vmem>>, %arg9: memref<1x6x32xf32, #tpu.memory_space<vmem>>, %arg10: memref<8x32xf32, #tpu.memory_space<vmem>>) attributes {dimension_semantics = [#tpu.dimension_semantics<parallel>, #tpu.dimension_semantics<arbitrary>], iteration_bounds = array<i64: 2, 2>, scalar_prefetch = 0 : i64, scratch_operands = 0 : i64, tpu.core_type = #tpu.core_type<tc>, window_params = [{transform_indices = @transform_0, window_bounds = array<i64: 8, 32>}, {transform_indices = @transform_1, window_bounds = array<i64: 1, 32, 96>}, {transform_indices = @transform_2, window_bounds = array<i64: 1, 1, 96>}, {transform_indices = @transform_3, window_bounds = array<i64: 1, 32, 32>}, {transform_indices = @transform_4, window_bounds = array<i64: 1, 32, 128>}, {transform_indices = @transform_5, window_bounds = array<i64: 1, 1, 128>}, {transform_indices = @transform_6, window_bounds = array<i64: 1, 128, 32>}, {transform_indices = @transform_7, window_bounds = array<i64: 1, 6, 32>}, {transform_indices = @transform_8, window_bounds = array<i64: 8, 32>}]} {
    %c0_i32 = arith.constant 0 : i32
    %0 = arith.cmpi eq, %arg1, %c0_i32 : i32
    %1 = arith.extui %0 : i1 to i32
    %c0_i32_0 = arith.constant 0 : i32
    %2 = arith.cmpi ne, %1, %c0_i32_0 : i32
    scf.if %2 {
      %c0_58 = arith.constant 0 : index
      %c0_59 = arith.constant 0 : index
      %192 = vector.load %arg2[%c0_58, %c0_59] : memref<8x32xf32, #tpu.memory_space<vmem>>, vector<8x32xf32>
      %c0_60 = arith.constant 0 : index
      %c0_61 = arith.constant 0 : index
      %193 = vector.load %arg10[%c0_60, %c0_61] : memref<8x32xf32, #tpu.memory_space<vmem>>, vector<8x32xf32>
      tpu.vector_store %arg10[%c0_60, %c0_61], %192 {strides = array<i32>} : memref<8x32xf32, #tpu.memory_space<vmem>>, vector<8x32xf32>,
    } else {
    }
    %c0 = arith.constant 0 : index
    %c0_1 = arith.constant 0 : index
    %3 = vector.load %arg10[%c0, %c0_1] : memref<8x32xf32, #tpu.memory_space<vmem>>, vector<8x32xf32>
    %c0_2 = arith.constant 0 : index
    %c0_3 = arith.constant 0 : index
    %c0_4 = arith.constant 0 : index
    %4 = vector.load %arg9[%c0_2, %c0_3, %c0_4] : memref<1x6x32xf32, #tpu.memory_space<vmem>>, vector<1x6x32xf32>
    %5 = vector.shape_cast %4 : vector<1x6x32xf32> to vector<6x32xf32>
    %6 = vector.extract_strided_slice %5 {offsets = [0, 0], sizes = [1, 32], strides = [1, 1]} : vector<6x32xf32> to vector<1x32xf32>
    %7 = vector.extract_strided_slice %5 {offsets = [1, 0], sizes = [1, 32], strides = [1, 1]} : vector<6x32xf32> to vector<1x32xf32>
    %8 = vector.extract_strided_slice %5 {offsets = [2, 0], sizes = [1, 32], strides = [1, 1]} : vector<6x32xf32> to vector<1x32xf32>
    %9 = vector.extract_strided_slice %5 {offsets = [3, 0], sizes = [1, 32], strides = [1, 1]} : vector<6x32xf32> to vector<1x32xf32>
    %10 = vector.extract_strided_slice %5 {offsets = [4, 0], sizes = [1, 32], strides = [1, 1]} : vector<6x32xf32> to vector<1x32xf32>
    %11 = vector.extract_strided_slice %5 {offsets = [5, 0], sizes = [1, 32], strides = [1, 1]} : vector<6x32xf32> to vector<1x32xf32>
    %12 = tpu.iota {dimensions = array<i32: 0>} : vector<8x8xi32>
    %13 = tpu.iota {dimensions = array<i32: 1>} : vector<8x8xi32>
    %14 = arith.cmpi sge, %12, %13 : vector<8x8xi32>
    %cst = arith.constant 0.000000e+00 : f32
    %cst_5 = arith.constant -1.000000e+30 : f32
    %15 = vector.broadcast %cst : f32 to vector<8x8xf32>
    %16 = vector.broadcast %cst_5 : f32 to vector<8x8xf32>
    %17 = arith.select %14, %15, %16 : vector<8x8xi1>, vector<8x8xf32>
    %18 = vector.shape_cast %17 : vector<8x8xf32> to vector<1x8x8xf32>
    %cst_6 = arith.constant dense<0.000000e+00> : vector<8xf32>
    %19 = vector.multi_reduction <add>, %3, %cst_6 [1] : vector<8x32xf32> to vector<8xf32>
    %20 = vector.shape_cast %19 : vector<8xf32> to vector<8x1xf32>
    %cst_7 = arith.constant 3.200000e+01 : f32
    %21 = vector.broadcast %cst_7 : f32 to vector<8x1xf32>
    %22 = arith.divf %20, %21 : vector<8x1xf32>
    %23 = vector.broadcast %22 : vector<8x1xf32> to vector<8x32xf32>
    %24 = arith.subf %3, %23 : vector<8x32xf32>
    %25 = arith.mulf %24, %24 : vector<8x32xf32>
    %cst_8 = arith.constant dense<0.000000e+00> : vector<8xf32>
    %26 = vector.multi_reduction <add>, %25, %cst_8 [1] : vector<8x32xf32> to vector<8xf32>
    %27 = vector.shape_cast %26 : vector<8xf32> to vector<8x1xf32>
    %cst_9 = arith.constant 3.200000e+01 : f32
    %28 = vector.broadcast %cst_9 : f32 to vector<8x1xf32>
    %29 = arith.divf %27, %28 : vector<8x1xf32>
    %30 = vector.broadcast %22 : vector<8x1xf32> to vector<8x32xf32>
    %31 = arith.subf %3, %30 : vector<8x32xf32>
    %cst_10 = arith.constant 9.99999974E-6 : f32
    %32 = vector.broadcast %cst_10 : f32 to vector<8x1xf32>
    %33 = arith.addf %29, %32 : vector<8x1xf32>
    %34 = math.rsqrt %33 : vector<8x1xf32>
    %35 = vector.broadcast %34 : vector<8x1xf32> to vector<8x32xf32>
    %36 = arith.mulf %31, %35 : vector<8x32xf32>
    %37 = vector.broadcast %6 : vector<1x32xf32> to vector<8x32xf32>
    %38 = arith.mulf %36, %37 : vector<8x32xf32>
    %39 = vector.broadcast %7 : vector<1x32xf32> to vector<8x32xf32>
    %40 = arith.addf %38, %39 : vector<8x32xf32>
    %41 = arith.truncf %40 : vector<8x32xf32> to vector<8x32xbf16>
    %c0_11 = arith.constant 0 : index
    %c0_12 = arith.constant 0 : index
    %c0_13 = arith.constant 0 : index
    %42 = vector.load %arg3[%c0_11, %c0_12, %c0_13] : memref<1x32x96xbf16, #tpu.memory_space<vmem>>, vector<1x32x96xbf16>
    %43 = vector.shape_cast %42 : vector<1x32x96xbf16> to vector<32x96xbf16>
    %cst_14 = arith.constant dense<0.000000e+00> : vector<8x96xf32>
    %44 = tpu.matmul %41, %43, %cst_14 {dimension_numbers = #tpu.dot_dimension_numbers<[1], [0], [0], [1], [0, 0, 1, 1], [], []>} : vector<8x32xbf16>, vector<32x96xbf16>, vector<8x96xf32> -> vector<8x96xf32>
    %c0_15 = arith.constant 0 : index
    %c0_16 = arith.constant 0 : index
    %c0_17 = arith.constant 0 : index
    %45 = vector.load %arg4[%c0_15, %c0_16, %c0_17] : memref<1x1x96xf32, #tpu.memory_space<vmem>>, vector<1x1x96xf32>
    %46 = vector.shape_cast %45 : vector<1x1x96xf32> to vector<1x96xf32>
    %47 = vector.broadcast %46 : vector<1x96xf32> to vector<8x96xf32>
    %48 = arith.addf %44, %47 : vector<8x96xf32>
    %49 = vector.extract_strided_slice %48 {offsets = [0, 0], sizes = [8, 32], strides = [1, 1]} : vector<8x96xf32> to vector<8x32xf32>
    %cst_18 = arith.constant 0.353553385 : f32
    %50 = vector.broadcast %cst_18 : f32 to vector<8x32xf32>
    %51 = arith.mulf %49, %50 : vector<8x32xf32>
    %52 = arith.truncf %51 : vector<8x32xf32> to vector<8x32xbf16>
    %53 = vector.extract_strided_slice %48 {offsets = [0, 32], sizes = [8, 32], strides = [1, 1]} : vector<8x96xf32> to vector<8x32xf32>
    %54 = arith.truncf %53 : vector<8x32xf32> to vector<8x32xbf16>
    %55 = vector.extract_strided_slice %48 {offsets = [0, 64], sizes = [8, 32], strides = [1, 1]} : vector<8x96xf32> to vector<8x32xf32>
    %56 = arith.truncf %55 : vector<8x32xf32> to vector<8x32xbf16>
    %57 = vector.extract_strided_slice %52 {offsets = [0, 0], sizes = [8, 8], strides = [1, 1]} : vector<8x32xbf16> to vector<8x8xbf16>
    %58 = vector.shape_cast %57 : vector<8x8xbf16> to vector<1x8x8xbf16>
    %59 = vector.extract_strided_slice %54 {offsets = [0, 0], sizes = [8, 8], strides = [1, 1]} : vector<8x32xbf16> to vector<8x8xbf16>
    %60 = vector.shape_cast %59 : vector<8x8xbf16> to vector<1x8x8xbf16>
    %61 = vector.extract_strided_slice %56 {offsets = [0, 0], sizes = [8, 8], strides = [1, 1]} : vector<8x32xbf16> to vector<8x8xbf16>
    %62 = vector.shape_cast %61 : vector<8x8xbf16> to vector<1x8x8xbf16>
    "tpu.trace_start"() <{level = 10 : i32, message = "bqd,bkd->bqk"}> : () -> ()
    %cst_19 = arith.constant dense<0.000000e+00> : vector<1x8x8xf32>
    %63 = tpu.matmul %58, %60, %cst_19 {dimension_numbers = #tpu.dot_dimension_numbers<[2], [2], [1], [1], [0, 0, 0, 1, 1, 1], [0], [0]>} : vector<1x8x8xbf16>, vector<1x8x8xbf16>, vector<1x8x8xf32> -> vector<1x8x8xf32>
    "tpu.trace_stop"() : () -> ()
    %64 = arith.addf %63, %18 : vector<1x8x8xf32>
    %cst_20 = arith.constant dense<0xFF800000> : vector<1x8xf32>
    %65 = vector.multi_reduction <maximumf>, %64, %cst_20 [2] : vector<1x8x8xf32> to vector<1x8xf32>
    %66 = vector.shape_cast %65 : vector<1x8xf32> to vector<1x8x1xf32>
    %67 = vector.broadcast %66 : vector<1x8x1xf32> to vector<1x8x8xf32>
    %68 = arith.subf %64, %67 : vector<1x8x8xf32>
    %69 = math.exp %68 : vector<1x8x8xf32>
    %cst_21 = arith.constant dense<0.000000e+00> : vector<1x8xf32>
    %70 = vector.multi_reduction <add>, %69, %cst_21 [2] : vector<1x8x8xf32> to vector<1x8xf32>
    %71 = vector.shape_cast %70 : vector<1x8xf32> to vector<1x8x1xf32>
    %72 = tpu.reciprocal %71 {approx = true} : vector<1x8x1xf32> -> vector<1x8x1xf32>
    %73 = arith.truncf %69 : vector<1x8x8xf32> to vector<1x8x8xbf16>
    "tpu.trace_start"() <{level = 10 : i32, message = "bqk,bkd->bqd"}> : () -> ()
    %cst_22 = arith.constant dense<0.000000e+00> : vector<1x8x8xf32>
    %74 = tpu.matmul %73, %62, %cst_22 {dimension_numbers = #tpu.dot_dimension_numbers<[2], [1], [1], [2], [0, 0, 0, 1, 1, 2], [0], [0]>} : vector<1x8x8xbf16>, vector<1x8x8xbf16>, vector<1x8x8xf32> -> vector<1x8x8xf32>
    "tpu.trace_stop"() : () -> ()
    %75 = vector.broadcast %72 : vector<1x8x1xf32> to vector<1x8x8xf32>
    %76 = arith.mulf %74, %75 : vector<1x8x8xf32>
    %77 = vector.shape_cast %76 : vector<1x8x8xf32> to vector<8x8xf32>
    %78 = arith.truncf %77 : vector<8x8xf32> to vector<8x8xbf16>
    %79 = vector.extract_strided_slice %52 {offsets = [0, 8], sizes = [8, 8], strides = [1, 1]} : vector<8x32xbf16> to vector<8x8xbf16>
    %80 = vector.shape_cast %79 : vector<8x8xbf16> to vector<1x8x8xbf16>
    %81 = vector.extract_strided_slice %54 {offsets = [0, 8], sizes = [8, 8], strides = [1, 1]} : vector<8x32xbf16> to vector<8x8xbf16>
    %82 = vector.shape_cast %81 : vector<8x8xbf16> to vector<1x8x8xbf16>
    %83 = vector.extract_strided_slice %56 {offsets = [0, 8], sizes = [8, 8], strides = [1, 1]} : vector<8x32xbf16> to vector<8x8xbf16>
    %84 = vector.shape_cast %83 : vector<8x8xbf16> to vector<1x8x8xbf16>
    "tpu.trace_start"() <{level = 10 : i32, message = "bqd,bkd->bqk"}> : () -> ()
    %cst_23 = arith.constant dense<0.000000e+00> : vector<1x8x8xf32>
    %85 = tpu.matmul %80, %82, %cst_23 {dimension_numbers = #tpu.dot_dimension_numbers<[2], [2], [1], [1], [0, 0, 0, 1, 1, 1], [0], [0]>} : vector<1x8x8xbf16>, vector<1x8x8xbf16>, vector<1x8x8xf32> -> vector<1x8x8xf32>
    "tpu.trace_stop"() : () -> ()
    %86 = arith.addf %85, %18 : vector<1x8x8xf32>
    %cst_24 = arith.constant dense<0xFF800000> : vector<1x8xf32>
    %87 = vector.multi_reduction <maximumf>, %86, %cst_24 [2] : vector<1x8x8xf32> to vector<1x8xf32>
    %88 = vector.shape_cast %87 : vector<1x8xf32> to vector<1x8x1xf32>
    %89 = vector.broadcast %88 : vector<1x8x1xf32> to vector<1x8x8xf32>
    %90 = arith.subf %86, %89 : vector<1x8x8xf32>
    %91 = math.exp %90 : vector<1x8x8xf32>
    %cst_25 = arith.constant dense<0.000000e+00> : vector<1x8xf32>
    %92 = vector.multi_reduction <add>, %91, %cst_25 [2] : vector<1x8x8xf32> to vector<1x8xf32>
    %93 = vector.shape_cast %92 : vector<1x8xf32> to vector<1x8x1xf32>
    %94 = tpu.reciprocal %93 {approx = true} : vector<1x8x1xf32> -> vector<1x8x1xf32>
    %95 = arith.truncf %91 : vector<1x8x8xf32> to vector<1x8x8xbf16>
    "tpu.trace_start"() <{level = 10 : i32, message = "bqk,bkd->bqd"}> : () -> ()
    %cst_26 = arith.constant dense<0.000000e+00> : vector<1x8x8xf32>
    %96 = tpu.matmul %95, %84, %cst_26 {dimension_numbers = #tpu.dot_dimension_numbers<[2], [1], [1], [2], [0, 0, 0, 1, 1, 2], [0], [0]>} : vector<1x8x8xbf16>, vector<1x8x8xbf16>, vector<1x8x8xf32> -> vector<1x8x8xf32>
    "tpu.trace_stop"() : () -> ()
    %97 = vector.broadcast %94 : vector<1x8x1xf32> to vector<1x8x8xf32>
    %98 = arith.mulf %96, %97 : vector<1x8x8xf32>
    %99 = vector.shape_cast %98 : vector<1x8x8xf32> to vector<8x8xf32>
    %100 = arith.truncf %99 : vector<8x8xf32> to vector<8x8xbf16>
    %101 = vector.extract_strided_slice %52 {offsets = [0, 16], sizes = [8, 8], strides = [1, 1]} : vector<8x32xbf16> to vector<8x8xbf16>
    %102 = vector.shape_cast %101 : vector<8x8xbf16> to vector<1x8x8xbf16>
    %103 = vector.extract_strided_slice %54 {offsets = [0, 16], sizes = [8, 8], strides = [1, 1]} : vector<8x32xbf16> to vector<8x8xbf16>
    %104 = vector.shape_cast %103 : vector<8x8xbf16> to vector<1x8x8xbf16>
    %105 = vector.extract_strided_slice %56 {offsets = [0, 16], sizes = [8, 8], strides = [1, 1]} : vector<8x32xbf16> to vector<8x8xbf16>
    %106 = vector.shape_cast %105 : vector<8x8xbf16> to vector<1x8x8xbf16>
    "tpu.trace_start"() <{level = 10 : i32, message = "bqd,bkd->bqk"}> : () -> ()
    %cst_27 = arith.constant dense<0.000000e+00> : vector<1x8x8xf32>
    %107 = tpu.matmul %102, %104, %cst_27 {dimension_numbers = #tpu.dot_dimension_numbers<[2], [2], [1], [1], [0, 0, 0, 1, 1, 1], [0], [0]>} : vector<1x8x8xbf16>, vector<1x8x8xbf16>, vector<1x8x8xf32> -> vector<1x8x8xf32>
    "tpu.trace_stop"() : () -> ()
    %108 = arith.addf %107, %18 : vector<1x8x8xf32>
    %cst_28 = arith.constant dense<0xFF800000> : vector<1x8xf32>
    %109 = vector.multi_reduction <maximumf>, %108, %cst_28 [2] : vector<1x8x8xf32> to vector<1x8xf32>
    %110 = vector.shape_cast %109 : vector<1x8xf32> to vector<1x8x1xf32>
    %111 = vector.broadcast %110 : vector<1x8x1xf32> to vector<1x8x8xf32>
    %112 = arith.subf %108, %111 : vector<1x8x8xf32>
    %113 = math.exp %112 : vector<1x8x8xf32>
    %cst_29 = arith.constant dense<0.000000e+00> : vector<1x8xf32>
    %114 = vector.multi_reduction <add>, %113, %cst_29 [2] : vector<1x8x8xf32> to vector<1x8xf32>
    %115 = vector.shape_cast %114 : vector<1x8xf32> to vector<1x8x1xf32>
    %116 = tpu.reciprocal %115 {approx = true} : vector<1x8x1xf32> -> vector<1x8x1xf32>
    %117 = arith.truncf %113 : vector<1x8x8xf32> to vector<1x8x8xbf16>
    "tpu.trace_start"() <{level = 10 : i32, message = "bqk,bkd->bqd"}> : () -> ()
    %cst_30 = arith.constant dense<0.000000e+00> : vector<1x8x8xf32>
    %118 = tpu.matmul %117, %106, %cst_30 {dimension_numbers = #tpu.dot_dimension_numbers<[2], [1], [1], [2], [0, 0, 0, 1, 1, 2], [0], [0]>} : vector<1x8x8xbf16>, vector<1x8x8xbf16>, vector<1x8x8xf32> -> vector<1x8x8xf32>
    "tpu.trace_stop"() : () -> ()
    %119 = vector.broadcast %116 : vector<1x8x1xf32> to vector<1x8x8xf32>
    %120 = arith.mulf %118, %119 : vector<1x8x8xf32>
    %121 = vector.shape_cast %120 : vector<1x8x8xf32> to vector<8x8xf32>
    %122 = arith.truncf %121 : vector<8x8xf32> to vector<8x8xbf16>
    %123 = vector.extract_strided_slice %52 {offsets = [0, 24], sizes = [8, 8], strides = [1, 1]} : vector<8x32xbf16> to vector<8x8xbf16>
    %124 = vector.shape_cast %123 : vector<8x8xbf16> to vector<1x8x8xbf16>
    %125 = vector.extract_strided_slice %54 {offsets = [0, 24], sizes = [8, 8], strides = [1, 1]} : vector<8x32xbf16> to vector<8x8xbf16>
    %126 = vector.shape_cast %125 : vector<8x8xbf16> to vector<1x8x8xbf16>
    %127 = vector.extract_strided_slice %56 {offsets = [0, 24], sizes = [8, 8], strides = [1, 1]} : vector<8x32xbf16> to vector<8x8xbf16>
    %128 = vector.shape_cast %127 : vector<8x8xbf16> to vector<1x8x8xbf16>
    "tpu.trace_start"() <{level = 10 : i32, message = "bqd,bkd->bqk"}> : () -> ()
    %cst_31 = arith.constant dense<0.000000e+00> : vector<1x8x8xf32>
    %129 = tpu.matmul %124, %126, %cst_31 {dimension_numbers = #tpu.dot_dimension_numbers<[2], [2], [1], [1], [0, 0, 0, 1, 1, 1], [0], [0]>} : vector<1x8x8xbf16>, vector<1x8x8xbf16>, vector<1x8x8xf32> -> vector<1x8x8xf32>
    "tpu.trace_stop"() : () -> ()
    %130 = arith.addf %129, %18 : vector<1x8x8xf32>
    %cst_32 = arith.constant dense<0xFF800000> : vector<1x8xf32>
    %131 = vector.multi_reduction <maximumf>, %130, %cst_32 [2] : vector<1x8x8xf32> to vector<1x8xf32>
    %132 = vector.shape_cast %131 : vector<1x8xf32> to vector<1x8x1xf32>
    %133 = vector.broadcast %132 : vector<1x8x1xf32> to vector<1x8x8xf32>
    %134 = arith.subf %130, %133 : vector<1x8x8xf32>
    %135 = math.exp %134 : vector<1x8x8xf32>
    %cst_33 = arith.constant dense<0.000000e+00> : vector<1x8xf32>
    %136 = vector.multi_reduction <add>, %135, %cst_33 [2] : vector<1x8x8xf32> to vector<1x8xf32>
    %137 = vector.shape_cast %136 : vector<1x8xf32> to vector<1x8x1xf32>
    %138 = tpu.reciprocal %137 {approx = true} : vector<1x8x1xf32> -> vector<1x8x1xf32>
    %139 = arith.truncf %135 : vector<1x8x8xf32> to vector<1x8x8xbf16>
    "tpu.trace_start"() <{level = 10 : i32, message = "bqk,bkd->bqd"}> : () -> ()
    %cst_34 = arith.constant dense<0.000000e+00> : vector<1x8x8xf32>
    %140 = tpu.matmul %139, %128, %cst_34 {dimension_numbers = #tpu.dot_dimension_numbers<[2], [1], [1], [2], [0, 0, 0, 1, 1, 2], [0], [0]>} : vector<1x8x8xbf16>, vector<1x8x8xbf16>, vector<1x8x8xf32> -> vector<1x8x8xf32>
    "tpu.trace_stop"() : () -> ()
    %141 = vector.broadcast %138 : vector<1x8x1xf32> to vector<1x8x8xf32>
    %142 = arith.mulf %140, %141 : vector<1x8x8xf32>
    %143 = vector.shape_cast %142 : vector<1x8x8xf32> to vector<8x8xf32>
    %144 = arith.truncf %143 : vector<8x8xf32> to vector<8x8xbf16>
    %145 = tpu.concatenate %78, %100, %122, %144 in 1 : vector<8x8xbf16>, vector<8x8xbf16>, vector<8x8xbf16>, vector<8x8xbf16> -> vector<8x32xbf16>
    %c0_35 = arith.constant 0 : index
    %c0_36 = arith.constant 0 : index
    %c0_37 = arith.constant 0 : index
    %146 = vector.load %arg5[%c0_35, %c0_36, %c0_37] : memref<1x32x32xbf16, #tpu.memory_space<vmem>>, vector<1x32x32xbf16>
    %147 = vector.shape_cast %146 : vector<1x32x32xbf16> to vector<32x32xbf16>
    %cst_38 = arith.constant dense<0.000000e+00> : vector<8x32xf32>
    %148 = tpu.matmul %145, %147, %cst_38 {dimension_numbers = #tpu.dot_dimension_numbers<[1], [0], [0], [1], [0, 0, 1, 1], [], []>} : vector<8x32xbf16>, vector<32x32xbf16>, vector<8x32xf32> -> vector<8x32xf32>
    %149 = vector.broadcast %10 : vector<1x32xf32> to vector<8x32xf32>
    %150 = arith.addf %148, %149 : vector<8x32xf32>
    %151 = arith.addf %3, %150 : vector<8x32xf32>
    %cst_39 = arith.constant dense<0.000000e+00> : vector<8xf32>
    %152 = vector.multi_reduction <add>, %151, %cst_39 [1] : vector<8x32xf32> to vector<8xf32>
    %153 = vector.shape_cast %152 : vector<8xf32> to vector<8x1xf32>
    %cst_40 = arith.constant 3.200000e+01 : f32
    %154 = vector.broadcast %cst_40 : f32 to vector<8x1xf32>
    %155 = arith.divf %153, %154 : vector<8x1xf32>
    %156 = vector.broadcast %155 : vector<8x1xf32> to vector<8x32xf32>
    %157 = arith.subf %151, %156 : vector<8x32xf32>
    %158 = arith.mulf %157, %157 : vector<8x32xf32>
    %cst_41 = arith.constant dense<0.000000e+00> : vector<8xf32>
    %159 = vector.multi_reduction <add>, %158, %cst_41 [1] : vector<8x32xf32> to vector<8xf32>
    %160 = vector.shape_cast %159 : vector<8xf32> to vector<8x1xf32>
    %cst_42 = arith.constant 3.200000e+01 : f32
    %161 = vector.broadcast %cst_42 : f32 to vector<8x1xf32>
    %162 = arith.divf %160, %161 : vector<8x1xf32>
    %163 = vector.broadcast %155 : vector<8x1xf32> to vector<8x32xf32>
    %164 = arith.subf %151, %163 : vector<8x32xf32>
    %cst_43 = arith.constant 9.99999974E-6 : f32
    %165 = vector.broadcast %cst_43 : f32 to vector<8x1xf32>
    %166 = arith.addf %162, %165 : vector<8x1xf32>
    %167 = math.rsqrt %166 : vector<8x1xf32>
    %168 = vector.broadcast %167 : vector<8x1xf32> to vector<8x32xf32>
    %169 = arith.mulf %164, %168 : vector<8x32xf32>
    %170 = vector.broadcast %8 : vector<1x32xf32> to vector<8x32xf32>
    %171 = arith.mulf %169, %170 : vector<8x32xf32>
    %172 = vector.broadcast %9 : vector<1x32xf32> to vector<8x32xf32>
    %173 = arith.addf %171, %172 : vector<8x32xf32>
    %174 = arith.truncf %173 : vector<8x32xf32> to vector<8x32xbf16>
    %c0_44 = arith.constant 0 : index
    %c0_45 = arith.constant 0 : index
    %c0_46 = arith.constant 0 : index
    %175 = vector.load %arg6[%c0_44, %c0_45, %c0_46] : memref<1x32x128xbf16, #tpu.memory_space<vmem>>, vector<1x32x128xbf16>
    %176 = vector.shape_cast %175 : vector<1x32x128xbf16> to vector<32x128xbf16>
    %cst_47 = arith.constant dense<0.000000e+00> : vector<8x128xf32>
    %177 = tpu.matmul %174, %176, %cst_47 {dimension_numbers = #tpu.dot_dimension_numbers<[1], [0], [0], [1], [0, 0, 1, 1], [], []>} : vector<8x32xbf16>, vector<32x128xbf16>, vector<8x128xf32> -> vector<8x128xf32>
    %c0_48 = arith.constant 0 : index
    %c0_49 = arith.constant 0 : index
    %c0_50 = arith.constant 0 : index
    %178 = vector.load %arg7[%c0_48, %c0_49, %c0_50] : memref<1x1x128xf32, #tpu.memory_space<vmem>>, vector<1x1x128xf32>
    %179 = vector.shape_cast %178 : vector<1x1x128xf32> to vector<1x128xf32>
    %180 = vector.broadcast %179 : vector<1x128xf32> to vector<8x128xf32>
    %181 = arith.addf %177, %180 : vector<8x128xf32>
    %cst_51 = arith.constant 0.000000e+00 : f32
    %182 = vector.broadcast %cst_51 : f32 to vector<8x128xf32>
    %183 = arith.maximumf %181, %182 : vector<8x128xf32>
    %184 = arith.truncf %183 : vector<8x128xf32> to vector<8x128xbf16>
    %c0_52 = arith.constant 0 : index
    %c0_53 = arith.constant 0 : index
    %c0_54 = arith.constant 0 : index
    %185 = vector.load %arg8[%c0_52, %c0_53, %c0_54] : memref<1x128x32xbf16, #tpu.memory_space<vmem>>, vector<1x128x32xbf16>
    %186 = vector.shape_cast %185 : vector<1x128x32xbf16> to vector<128x32xbf16>
    %cst_55 = arith.constant dense<0.000000e+00> : vector<8x32xf32>
    %187 = tpu.matmul %184, %186, %cst_55 {dimension_numbers = #tpu.dot_dimension_numbers<[1], [0], [0], [1], [0, 0, 1, 1], [], []>} : vector<8x128xbf16>, vector<128x32xbf16>, vector<8x32xf32> -> vector<8x32xf32>
    %188 = vector.broadcast %11 : vector<1x32xf32> to vector<8x32xf32>
    %189 = arith.addf %187, %188 : vector<8x32xf32>
    %190 = arith.addf %151, %189 : vector<8x32xf32>
    %c0_56 = arith.constant 0 : index
    %c0_57 = arith.constant 0 : index
    %191 = vector.load %arg10[%c0_56, %c0_57] : memref<8x32xf32, #tpu.memory_space<vmem>>, vector<8x32xf32>
    tpu.vector_store %arg10[%c0_56, %c0_57], %190 {strides = array<i32>} : memref<8x32xf32, #tpu.memory_space<vmem>>, vector<8x32xf32>,
    return
  }
  func.func @transform_0(%arg0: i32, %arg1: i32) -> (i32, i32) {
    %c0_i32 = arith.constant 0 : i32
    %c0_i32_0 = arith.constant 0 : i32
    return %arg0, %c0_i32 : i32, i32
  }
  func.func @transform_1(%arg0: i32, %arg1: i32) -> (i32, i32, i32) {
    %c0_i32 = arith.constant 0 : i32
    %c0_i32_0 = arith.constant 0 : i32
    %c0_i32_1 = arith.constant 0 : i32
    return %arg1, %c0_i32, %c0_i32_0 : i32, i32, i32
  }
  func.func @transform_2(%arg0: i32, %arg1: i32) -> (i32, i32, i32) {
    %c0_i32 = arith.constant 0 : i32
    %c0_i32_0 = arith.constant 0 : i32
    %c0_i32_1 = arith.constant 0 : i32
    return %arg1, %c0_i32, %c0_i32_0 : i32, i32, i32
  }
  func.func @transform_3(%arg0: i32, %arg1: i32) -> (i32, i32, i32) {
    %c0_i32 = arith.constant 0 : i32
    %c0_i32_0 = arith.constant 0 : i32
    %c0_i32_1 = arith.constant 0 : i32
    return %arg1, %c0_i32, %c0_i32_0 : i32, i32, i32
  }
  func.func @transform_4(%arg0: i32, %arg1: i32) -> (i32, i32, i32) {
    %c0_i32 = arith.constant 0 : i32
    %c0_i32_0 = arith.constant 0 : i32
    %c0_i32_1 = arith.constant 0 : i32
    return %arg1, %c0_i32, %c0_i32_0 : i32, i32, i32
  }
  func.func @transform_5(%arg0: i32, %arg1: i32) -> (i32, i32, i32) {
    %c0_i32 = arith.constant 0 : i32
    %c0_i32_0 = arith.constant 0 : i32
    %c0_i32_1 = arith.constant 0 : i32
    return %arg1, %c0_i32, %c0_i32_0 : i32, i32, i32
  }
  func.func @transform_6(%arg0: i32, %arg1: i32) -> (i32, i32, i32) {
    %c0_i32 = arith.constant 0 : i32
    %c0_i32_0 = arith.constant 0 : i32
    %c0_i32_1 = arith.constant 0 : i32
    return %arg1, %c0_i32, %c0_i32_0 : i32, i32, i32
  }
  func.func @transform_7(%arg0: i32, %arg1: i32) -> (i32, i32, i32) {
    %c0_i32 = arith.constant 0 : i32
    %c0_i32_0 = arith.constant 0 : i32
    %c0_i32_1 = arith.constant 0 : i32
    return %arg1, %c0_i32, %c0_i32_0 : i32, i32, i32
  }
  func.func @transform_8(%arg0: i32, %arg1: i32) -> (i32, i32) {
    %c0_i32 = arith.constant 0 : i32
    %c0_i32_0 = arith.constant 0 : i32
    return %arg0, %c0_i32 : i32, i32
  }
}

</mosaic_0001>

<llo_original>
// kernel: tpu_custom_call.1
$region0: #{tpu_custom_call.1}
  #allocation0 [shape = 'u32[]', space=smem, size = 0x4, offset = 0x4, fixed_abs, tag = 'smem constant byte address 0x4 - core index']
  #allocation1 [shape = 'u32[144,128]{1,0:T(1,128)}', space=vmem, size = 0x12000, scoped, tag = 'internal scratch']
  %s0 = inlined_call_operand.vmem [shape: f32[16,32], index: 0, kind: input, shape index: {}]
  %s1 = inlined_call_operand.vmem [shape: bf16[2,32,96], index: 1, kind: input, shape index: {}]
  %s2 = inlined_call_operand.vmem [shape: f32[2,1,96], index: 2, kind: input, shape index: {}]
  %s3 = inlined_call_operand.vmem [shape: bf16[2,32,32], index: 3, kind: input, shape index: {}]
  %s4 = inlined_call_operand.vmem [shape: bf16[2,32,128], index: 4, kind: input, shape index: {}]
  %s5 = inlined_call_operand.vmem [shape: f32[2,1,128], index: 5, kind: input, shape index: {}]
  %s6 = inlined_call_operand.vmem [shape: bf16[2,128,32], index: 6, kind: input, shape index: {}]
  %s7 = inlined_call_operand.vmem [shape: f32[2,6,32], index: 7, kind: input, shape index: {}]
  %s8 = inlined_call_operand.hbm [shape: f32[16,32], index: 8, kind: output, shape index: {}]
  %s9 = sld [smem:[#allocation0]]
  $region69: #{tpu_custom_call.1} parent=0
    _
  %s11 = ssub.s32 1, %s9
  %s12 = scalar_select 0, %s11, %s9
  $region1: #{tpu_custom_call.1} parent=0
    #allocation2 [shape = 'u8[8192]{0}', space=vmem, size = 0x2000, scoped, tag = 'output window, operand 0']
    #allocation3 [shape = 's32[2]{0}', space=sflag, size = 0x8, scoped, tag = 'scoped memory for tpu_custom_call.1']
    %13 = vsyncpa [#allocation3], 0
    %s14 = scalar_lea.sflag [#allocation3], 1
    %15 = vsyncpa %s14, 0
    loop: start=0, step=1, limit=6
    $region2: #{tpu_custom_call.1} parent=1 // loop_pre_header
      _
    $region3: #{tpu_custom_call.1} parent=1 // loop_header
      %s17 = sphi 0, %s21
      %p18 = scmp.ge.s32.totalorder %s17, 6
      %s24 = sphi 0, %s36
      %s25 = sphi 0, %s32
      %s26 = sphi 0, %s24
      %s27 = sphi 0, %s25
      %s28 = sphi 0, %s26
      %s29 = sphi 0, %s27
      %s39 = sphi 0, %s41
      %s42 = sphi 0, %s39
      %s43 = sphi 0, %s42
      %s59 = sphi 0, %s43
      %s65 = sphi 0, %s67
      %s68 = sphi 0, %s65
      %s69 = sphi 0, %s68
      %s85 = sphi 0, %s69
      %s91 = sphi 0, %s93
      %s94 = sphi 0, %s91
      %s95 = sphi 0, %s94
      %s111 = sphi 0, %s95
      %s117 = sphi 0, %s119
      %s120 = sphi 0, %s117
      %s121 = sphi 0, %s120
      %s137 = sphi 0, %s121
      %s143 = sphi 0, %s145
      %s146 = sphi 0, %s143
      %s147 = sphi 0, %s146
      %s163 = sphi 0, %s147
      %s169 = sphi 0, %s171
      %s172 = sphi 0, %s169
      %s173 = sphi 0, %s172
      %s189 = sphi 0, %s173
      %s195 = sphi 0, %s197
      %s198 = sphi 0, %s195
      %s199 = sphi 0, %s198
      %s215 = sphi 0, %s199
      %s221 = sphi 0, %s223
      %s224 = sphi 0, %s221
      %s225 = sphi 0, %s224
      %s241 = sphi 0, %s225
      %s247 = sphi 0, %s249
      %s250 = sphi 0, %s247
      %s251 = sphi 0, %s250
      %s267 = sphi 0, %s251
    $region4: #{tpu_custom_call.1} parent=1 // loop_header_branch
      %20 = sbr.rel (%p18) target = $region8
    $region5: #{tpu_custom_call.1} parent=1 // loop_body
      %s22 = ssub.s32 %s17, 1
      %s23 = ssub.s32 %s17, 2
      %s30 = sadd.s32 1, %s25
      %p31 = scmp.ge.s32.totalorder %s30, 2
      %s32 = scalar_select %p31, 0, %s30
      %s33 = sadd.s32 1, %s24
      %s34 = scalar_select %p31, %s33, %s24
      %p35 = scmp.ge.s32.totalorder %s34, 2
      %s36 = scalar_select %p35, 0, %s34
      %s37 = ssub.s32 %s24, %s36
      %p38 = scmp.eq.s32.totalorder %s37, 0
      %s40 = sadd.s32 %s39, 1
      %s41 = scalar_select %p38, %s39, %s40
      %p44 = pneg %p38
      %p45 = scmp.eq.s32.totalorder %s17, 3
      %p46 = por %p44, %p45
      %p47 = scmp.ne.s32.totalorder %s39, %s42
      %p48 = scmp.eq.s32.totalorder %s17, 0
      %p49 = por %p47, %p48
      %p50 = scmp.ne.s32.totalorder %s39, %s42
      %p51 = scmp.eq.s32.totalorder %s22, 3
      %p52 = por %p50, %p51
      %p53 = scmp.ne.s32.totalorder %s42, %s43
      %p54 = scmp.eq.s32.totalorder %s22, 0
      %p55 = por %p53, %p54
      %p56 = scmp.ne.s32.totalorder %s42, %s43
      %p57 = scmp.eq.s32.totalorder %s23, 3
      %p58 = por %p56, %p57
      %p60 = scmp.ne.s32.totalorder %s43, %s59
      %p61 = scmp.eq.s32.totalorder %s23, 0
      %p62 = por %p60, %p61
      %s63 = ssub.s32 %s25, %s32
      %p64 = scmp.eq.s32.totalorder %s63, 0
      %s66 = sadd.s32 %s65, 1
      %s67 = scalar_select %p64, %s65, %s66
      %p70 = pneg %p64
      %p71 = scmp.eq.s32.totalorder %s17, 3
      %p72 = por %p70, %p71
      %p73 = scmp.ne.s32.totalorder %s65, %s68
      %p74 = scmp.eq.s32.totalorder %s17, 0
      %p75 = por %p73, %p74
      %p76 = scmp.ne.s32.totalorder %s65, %s68
      %p77 = scmp.eq.s32.totalorder %s22, 3
      %p78 = por %p76, %p77
      %p79 = scmp.ne.s32.totalorder %s68, %s69
      %p80 = scmp.eq.s32.totalorder %s22, 0
      %p81 = por %p79, %p80
      %p82 = scmp.ne.s32.totalorder %s68, %s69
      %p83 = scmp.eq.s32.totalorder %s23, 3
      %p84 = por %p82, %p83
      %p86 = scmp.ne.s32.totalorder %s69, %s85
      %p87 = scmp.eq.s32.totalorder %s23, 0
      %p88 = por %p86, %p87
      %s89 = ssub.s32 %s25, %s32
      %p90 = scmp.eq.s32.totalorder %s89, 0
      %s92 = sadd.s32 %s91, 1
      %s93 = scalar_select %p90, %s91, %s92
      %p96 = pneg %p90
      %p97 = scmp.eq.s32.totalorder %s17, 3
      %p98 = por %p96, %p97
      %p99 = scmp.ne.s32.totalorder %s91, %s94
      %p100 = scmp.eq.s32.totalorder %s17, 0
      %p101 = por %p99, %p100
      %p102 = scmp.ne.s32.totalorder %s91, %s94
      %p103 = scmp.eq.s32.totalorder %s22, 3
      %p104 = por %p102, %p103
      %p105 = scmp.ne.s32.totalorder %s94, %s95
      %p106 = scmp.eq.s32.totalorder %s22, 0
      %p107 = por %p105, %p106
      %p108 = scmp.ne.s32.totalorder %s94, %s95
      %p109 = scmp.eq.s32.totalorder %s23, 3
      %p110 = por %p108, %p109
      %p112 = scmp.ne.s32.totalorder %s95, %s111
      %p113 = scmp.eq.s32.totalorder %s23, 0
      %p114 = por %p112, %p113
      %s115 = ssub.s32 %s25, %s32
      %p116 = scmp.eq.s32.totalorder %s115, 0
      %s118 = sadd.s32 %s117, 1
      %s119 = scalar_select %p116, %s117, %s118
      %p122 = pneg %p116
      %p123 = scmp.eq.s32.totalorder %s17, 3
      %p124 = por %p122, %p123
      %p125 = scmp.ne.s32.totalorder %s117, %s120
      %p126 = scmp.eq.s32.totalorder %s17, 0
      %p127 = por %p125, %p126
      %p128 = scmp.ne.s32.totalorder %s117, %s120
      %p129 = scmp.eq.s32.totalorder %s22, 3
      %p130 = por %p128, %p129
      %p131 = scmp.ne.s32.totalorder %s120, %s121
      %p132 = scmp.eq.s32.totalorder %s22, 0
      %p133 = por %p131, %p132
      %p134 = scmp.ne.s32.totalorder %s120, %s121
      %p135 = scmp.eq.s32.totalorder %s23, 3
      %p136 = por %p134, %p135
      %p138 = scmp.ne.s32.totalorder %s121, %s137
      %p139 = scmp.eq.s32.totalorder %s23, 0
      %p140 = por %p138, %p139
      %s141 = ssub.s32 %s25, %s32
      %p142 = scmp.eq.s32.totalorder %s141, 0
      %s144 = sadd.s32 %s143, 1
      %s145 = scalar_select %p142, %s143, %s144
      %p148 = pneg %p142
      %p149 = scmp.eq.s32.totalorder %s17, 3
      %p150 = por %p148, %p149
      %p151 = scmp.ne.s32.totalorder %s143, %s146
      %p152 = scmp.eq.s32.totalorder %s17, 0
      %p153 = por %p151, %p152
      %p154 = scmp.ne.s32.totalorder %s143, %s146
      %p155 = scmp.eq.s32.totalorder %s22, 3
      %p156 = por %p154, %p155
      %p157 = scmp.ne.s32.totalorder %s146, %s147
      %p158 = scmp.eq.s32.totalorder %s22, 0
      %p159 = por %p157, %p158
      %p160 = scmp.ne.s32.totalorder %s146, %s147
      %p161 = scmp.eq.s32.totalorder %s23, 3
      %p162 = por %p160, %p161
      %p164 = scmp.ne.s32.totalorder %s147, %s163
      %p165 = scmp.eq.s32.totalorder %s23, 0
      %p166 = por %p164, %p165
      %s167 = ssub.s32 %s25, %s32
      %p168 = scmp.eq.s32.totalorder %s167, 0
      %s170 = sadd.s32 %s169, 1
      %s171 = scalar_select %p168, %s169, %s170
      %p174 = pneg %p168
      %p175 = scmp.eq.s32.totalorder %s17, 3
      %p176 = por %p174, %p175
      %p177 = scmp.ne.s32.totalorder %s169, %s172
      %p178 = scmp.eq.s32.totalorder %s17, 0
      %p179 = por %p177, %p178
      %p180 = scmp.ne.s32.totalorder %s169, %s172
      %p181 = scmp.eq.s32.totalorder %s22, 3
      %p182 = por %p180, %p181
      %p183 = scmp.ne.s32.totalorder %s172, %s173
      %p184 = scmp.eq.s32.totalorder %s22, 0
      %p185 = por %p183, %p184
      %p186 = scmp.ne.s32.totalorder %s172, %s173
      %p187 = scmp.eq.s32.totalorder %s23, 3
      %p188 = por %p186, %p187
      %p190 = scmp.ne.s32.totalorder %s173, %s189
      %p191 = scmp.eq.s32.totalorder %s23, 0
      %p192 = por %p190, %p191
      %s193 = ssub.s32 %s25, %s32
      %p194 = scmp.eq.s32.totalorder %s193, 0
      %s196 = sadd.s32 %s195, 1
      %s197 = scalar_select %p194, %s195, %s196
      %p200 = pneg %p194
      %p201 = scmp.eq.s32.totalorder %s17, 3
      %p202 = por %p200, %p201
      %p203 = scmp.ne.s32.totalorder %s195, %s198
      %p204 = scmp.eq.s32.totalorder %s17, 0
      %p205 = por %p203, %p204
      %p206 = scmp.ne.s32.totalorder %s195, %s198
      %p207 = scmp.eq.s32.totalorder %s22, 3
      %p208 = por %p206, %p207
      %p209 = scmp.ne.s32.totalorder %s198, %s199
      %p210 = scmp.eq.s32.totalorder %s22, 0
      %p211 = por %p209, %p210
      %p212 = scmp.ne.s32.totalorder %s198, %s199
      %p213 = scmp.eq.s32.totalorder %s23, 3
      %p214 = por %p212, %p213
      %p216 = scmp.ne.s32.totalorder %s199, %s215
      %p217 = scmp.eq.s32.totalorder %s23, 0
      %p218 = por %p216, %p217
      %s219 = ssub.s32 %s25, %s32
      %p220 = scmp.eq.s32.totalorder %s219, 0
      %s222 = sadd.s32 %s221, 1
      %s223 = scalar_select %p220, %s221, %s222
      %p226 = pneg %p220
      %p227 = scmp.eq.s32.totalorder %s17, 3
      %p228 = por %p226, %p227
      %p229 = scmp.ne.s32.totalorder %s221, %s224
      %p230 = scmp.eq.s32.totalorder %s17, 0
      %p231 = por %p229, %p230
      %p232 = scmp.ne.s32.totalorder %s221, %s224
      %p233 = scmp.eq.s32.totalorder %s22, 3
      %p234 = por %p232, %p233
      %p235 = scmp.ne.s32.totalorder %s224, %s225
      %p236 = scmp.eq.s32.totalorder %s22, 0
      %p237 = por %p235, %p236
      %p238 = scmp.ne.s32.totalorder %s224, %s225
      %p239 = scmp.eq.s32.totalorder %s23, 3
      %p240 = por %p238, %p239
      %p242 = scmp.ne.s32.totalorder %s225, %s241
      %p243 = scmp.eq.s32.totalorder %s23, 0
      %p244 = por %p242, %p243
      %s245 = ssub.s32 %s24, %s36
      %p246 = scmp.eq.s32.totalorder %s245, 0
      %s248 = sadd.s32 %s247, 1
      %s249 = scalar_select %p246, %s247, %s248
      %p252 = pneg %p246
      %p253 = scmp.eq.s32.totalorder %s17, 3
      %p254 = por %p252, %p253
      %p255 = scmp.ne.s32.totalorder %s247, %s250
      %p256 = scmp.eq.s32.totalorder %s17, 0
      %p257 = por %p255, %p256
      %p258 = scmp.ne.s32.totalorder %s247, %s250
      %p259 = scmp.eq.s32.totalorder %s22, 3
      %p260 = por %p258, %p259
      %p261 = scmp.ne.s32.totalorder %s250, %s251
      %p262 = scmp.eq.s32.totalorder %s22, 0
      %p263 = por %p261, %p262
      %p264 = scmp.ne.s32.totalorder %s250, %s251
      %p265 = scmp.eq.s32.totalorder %s23, 3
      %p266 = por %p264, %p265
      %p268 = scmp.ne.s32.totalorder %s251, %s267
      %p269 = scmp.eq.s32.totalorder %s23, 0
      %p270 = por %p268, %p269
      %p271 = scmp.le.s32.totalorder 1, %s17
      %p272 = scmp.lt.s32.totalorder %s17, 5
      %p273 = pnand %p271, %p272
      %p274 = pneg %p273
      // Predicated region
      $region9: #{tpu_custom_call.1} parent=5 // pred_check
        _
      $region10: #{tpu_custom_call.1} parent=5 // pred_check_branch
        %276 = sbr.rel (%p273) target = $region12
      $region11: #{tpu_custom_call.1} parent=5 // pred_region
        %s277 = ssub.s32 %s17, 1
      $region12: #{tpu_custom_call.1} parent=5 // pred_fallthru
        _
      %p278 = scmp.lt.s32.totalorder %s17, 4
      // Predicated region
      $region13: #{tpu_custom_call.1} parent=5 // pred_check
        %p279 = pneg %p278
      $region14: #{tpu_custom_call.1} parent=5 // pred_check_branch
        %281 = sbr.rel (%p279) target = $region16
      $region15: #{tpu_custom_call.1} parent=5 // pred_region
        // Predicated region
        $region17: #{tpu_custom_call.1} parent=15 // pred_check
          %p282 = pneg %p49
        $region18: #{tpu_custom_call.1} parent=15 // pred_check_branch
          %284 = sbr.rel (%p282) target = $region20
        $region19: #{tpu_custom_call.1} parent=15 // pred_region
          %p285 = scmp.lt.s32.totalorder %s24, 1
          %s286 = scalar_select %p285, %s24, 1
          %s287 = smul.addr %s286, 8
          %s288 = scalar_lea.vmem %s0, %s287
        $region20: #{tpu_custom_call.1} parent=15 // pred_fallthru
          _
        // Predicated region
        $region21: #{tpu_custom_call.1} parent=15 // pred_check
          %p289 = pneg %p75
        $region22: #{tpu_custom_call.1} parent=15 // pred_check_branch
          %291 = sbr.rel (%p289) target = $region24
        $region23: #{tpu_custom_call.1} parent=15 // pred_region
          %p292 = scmp.lt.s32.totalorder %s25, 1
          %s293 = scalar_select %p292, %s25, 1
          %s294 = smul.addr %s293, 4
          %s295 = smul.addr %s294, 4
          %s296 = scalar_lea.vmem %s1, %s295
        $region24: #{tpu_custom_call.1} parent=15 // pred_fallthru
          _
        // Predicated region
        $region25: #{tpu_custom_call.1} parent=15 // pred_check
          %p297 = pneg %p101
        $region26: #{tpu_custom_call.1} parent=15 // pred_check_branch
          %299 = sbr.rel (%p297) target = $region28
        $region27: #{tpu_custom_call.1} parent=15 // pred_region
          %p300 = scmp.lt.s32.totalorder %s25, 1
          %s301 = scalar_select %p300, %s25, 1
          %s302 = scalar_lea.vmem %s2, %s301
        $region28: #{tpu_custom_call.1} parent=15 // pred_fallthru
          _
        // Predicated region
        $region29: #{tpu_custom_call.1} parent=15 // pred_check
          %p303 = pneg %p127
        $region30: #{tpu_custom_call.1} parent=15 // pred_check_branch
          %305 = sbr.rel (%p303) target = $region32
        $region31: #{tpu_custom_call.1} parent=15 // pred_region
          %p306 = scmp.lt.s32.totalorder %s25, 1
          %s307 = scalar_select %p306, %s25, 1
          %s308 = smul.addr %s307, 4
          %s309 = smul.addr %s308, 4
          %s310 = scalar_lea.vmem %s3, %s309
        $region32: #{tpu_custom_call.1} parent=15 // pred_fallthru
          _
        // Predicated region
        $region33: #{tpu_custom_call.1} parent=15 // pred_check
          %p311 = pneg %p153
        $region34: #{tpu_custom_call.1} parent=15 // pred_check_branch
          %313 = sbr.rel (%p311) target = $region36
        $region35: #{tpu_custom_call.1} parent=15 // pred_region
          %p314 = scmp.lt.s32.totalorder %s25, 1
          %s315 = scalar_select %p314, %s25, 1
          %s316 = smul.addr %s315, 4
          %s317 = smul.addr %s316, 4
          %s318 = scalar_lea.vmem %s4, %s317
        $region36: #{tpu_custom_call.1} parent=15 // pred_fallthru
          _
        // Predicated region
        $region37: #{tpu_custom_call.1} parent=15 // pred_check
          %p319 = pneg %p179
        $region38: #{tpu_custom_call.1} parent=15 // pred_check_branch
          %321 = sbr.rel (%p319) target = $region40
        $region39: #{tpu_custom_call.1} parent=15 // pred_region
          %p322 = scmp.lt.s32.totalorder %s25, 1
          %s323 = scalar_select %p322, %s25, 1
          %s324 = scalar_lea.vmem %s5, %s323
        $region40: #{tpu_custom_call.1} parent=15 // pred_fallthru
          _
        // Predicated region
        $region41: #{tpu_custom_call.1} parent=15 // pred_check
          %p325 = pneg %p205
        $region42: #{tpu_custom_call.1} parent=15 // pred_check_branch
          %327 = sbr.rel (%p325) target = $region44
        $region43: #{tpu_custom_call.1} parent=15 // pred_region
          %p328 = scmp.lt.s32.totalorder %s25, 1
          %s329 = scalar_select %p328, %s25, 1
          %s330 = smul.addr %s329, 16
          %s331 = smul.addr %s330, 4
          %s332 = scalar_lea.vmem %s6, %s331
        $region44: #{tpu_custom_call.1} parent=15 // pred_fallthru
          _
        // Predicated region
        $region45: #{tpu_custom_call.1} parent=15 // pred_check
          %p333 = pneg %p231
        $region46: #{tpu_custom_call.1} parent=15 // pred_check_branch
          %335 = sbr.rel (%p333) target = $region48
        $region47: #{tpu_custom_call.1} parent=15 // pred_region
          %p336 = scmp.lt.s32.totalorder %s25, 1
          %s337 = scalar_select %p336, %s25, 1
          %s338 = smul.addr %s337, 8
          %s339 = scalar_lea.vmem %s7, %s338
        $region48: #{tpu_custom_call.1} parent=15 // pred_fallthru
          _
      $region16: #{tpu_custom_call.1} parent=5 // pred_fallthru
        _
      %p340 = scmp.le.s32.totalorder 1, %s17
      %p341 = scmp.lt.s32.totalorder %s17, 5
      %p342 = pnand %p340, %p341
      %p343 = pneg %p342
      // Predicated region
      $region49: #{tpu_custom_call.1} parent=5 // pred_check
        _
      $region50: #{tpu_custom_call.1} parent=5 // pred_check_branch
        %345 = sbr.rel (%p342) target = $region52
      $region51: #{tpu_custom_call.1} parent=5 // pred_region
        %s346 = ssub.s32 %s17, 1
        %p347 = scmp.lt.s32.totalorder %s26, 1
        %s348 = scalar_select %p347, %s26, 1
        %s349 = smul.addr %s348, 8
        %s350 = scalar_lea.vmem %s0, %s349
        %p351 = pneg %p55
        %p352 = pneg %p52
        %p353 = scmp.lt.s32.totalorder %s27, 1
        %s354 = scalar_select %p353, %s27, 1
        %s355 = smul.addr %s354, 4
        %s356 = smul.addr %s355, 4
        %s357 = scalar_lea.vmem %s1, %s356
        %p358 = pneg %p81
        %p359 = pneg %p78
        %p360 = scmp.lt.s32.totalorder %s27, 1
        %s361 = scalar_select %p360, %s27, 1
        %s362 = scalar_lea.vmem %s2, %s361
        %p363 = pneg %p107
        %p364 = pneg %p104
        %p365 = scmp.lt.s32.totalorder %s27, 1
        %s366 = scalar_select %p365, %s27, 1
        %s367 = smul.addr %s366, 4
        %s368 = smul.addr %s367, 4
        %s369 = scalar_lea.vmem %s3, %s368
        %p370 = pneg %p133
        %p371 = pneg %p130
        %p372 = scmp.lt.s32.totalorder %s27, 1
        %s373 = scalar_select %p372, %s27, 1
        %s374 = smul.addr %s373, 4
        %s375 = smul.addr %s374, 4
        %s376 = scalar_lea.vmem %s4, %s375
        %p377 = pneg %p159
        %p378 = pneg %p156
        %p379 = scmp.lt.s32.totalorder %s27, 1
        %s380 = scalar_select %p379, %s27, 1
        %s381 = scalar_lea.vmem %s5, %s380
        %p382 = pneg %p185
        %p383 = pneg %p182
        %p384 = scmp.lt.s32.totalorder %s27, 1
        %s385 = scalar_select %p384, %s27, 1
        %s386 = smul.addr %s385, 16
        %s387 = smul.addr %s386, 4
        %s388 = scalar_lea.vmem %s6, %s387
        %p389 = pneg %p211
        %p390 = pneg %p208
        %p391 = scmp.lt.s32.totalorder %s27, 1
        %s392 = scalar_select %p391, %s27, 1
        %s393 = smul.addr %s392, 8
        %s394 = scalar_lea.vmem %s7, %s393
        %p395 = pneg %p237
        %p396 = pneg %p234
        %p397 = pneg %p263
        %p398 = pneg %p260
        %s399 = sand.u32 %s250, 1
        %s400 = scalar_lea.sflag [#allocation3], %s399
        %s401 = sand.u32 %s250, 1
        %s402 = smul.addr %s401, 8
        %s403 = scalar_lea.vmem [#allocation2], %s402
        %p404 = scmp.lt.s32.totalorder %s26, 1
        %s405 = scalar_select %p404, %s26, 1
        %s406 = smul.addr %s405, 8
        %s407 = scalar_lea.vmem %s0, %s406
        %p408 = scmp.lt.s32.totalorder %s27, 1
        %s409 = scalar_select %p408, %s27, 1
        %s410 = smul.addr %s409, 4
        %s411 = smul.addr %s410, 4
        %s412 = scalar_lea.vmem %s1, %s411
        %p413 = scmp.lt.s32.totalorder %s27, 1
        %s414 = scalar_select %p413, %s27, 1
        %s415 = scalar_lea.vmem %s2, %s414
        %p416 = scmp.lt.s32.totalorder %s27, 1
        %s417 = scalar_select %p416, %s27, 1
        %s418 = smul.addr %s417, 4
        %s419 = smul.addr %s418, 4
        %s420 = scalar_lea.vmem %s3, %s419
        %p421 = scmp.lt.s32.totalorder %s27, 1
        %s422 = scalar_select %p421, %s27, 1
        %s423 = smul.addr %s422, 4
        %s424 = smul.addr %s423, 4
        %s425 = scalar_lea.vmem %s4, %s424
        %p426 = scmp.lt.s32.totalorder %s27, 1
        %s427 = scalar_select %p426, %s27, 1
        %s428 = scalar_lea.vmem %s5, %s427
        %p429 = scmp.lt.s32.totalorder %s27, 1
        %s430 = scalar_select %p429, %s27, 1
        %s431 = smul.addr %s430, 16
        %s432 = smul.addr %s431, 4
        %s433 = scalar_lea.vmem %s6, %s432
        %p434 = scmp.lt.s32.totalorder %s27, 1
        %s435 = scalar_select %p434, %s27, 1
        %s436 = smul.addr %s435, 8
        %s437 = scalar_lea.vmem %s7, %s436
        %p439 = scmp.eq.s32.totalorder %s27, 0
        // Predicated region
        $region53: #{tpu_custom_call.1} parent=51 // pred_check
          %p440 = pneg %p439
        $region54: #{tpu_custom_call.1} parent=51 // pred_check_branch
          %442 = sbr.rel (%p440) target = $region56
        $region55: #{tpu_custom_call.1} parent=51 // pred_region
          %v443 = vld [vmem:[%s407] sm:$0xff]
          %vm444 = vcmask 261120
          %445 = vst.msk [vmem:[%s403] sm:$0xff] %vm444, %v443
        $region56: #{tpu_custom_call.1} parent=51 // pred_fallthru
          _
        %v446 = vld [vmem:[%s403] sm:$0xff]
        %v447 = vld [vmem:[%s437] sm:$0x3f]
        %v448 = vlaneseq
        %v449 = vshrl.u32 %v448, 7
        %v450 = vlaneseq
        %v451 = vand.u32 %v450, 127
        %vm452 = vcmp.ge.s32.totalorder %v449, %v451
        %v453 = vsel %vm452, 0.0, -1e+30
        %vm454 = vcmask 261120
        %v455 = vsel %vm454, %v446, 0.0
        %456 = vadd.xlane.f32.xlu0 %v455
        %v457 = vpop.xlane.xlu0 %456
        %v458 = vrcp.pop 32.0
        %v459 = vmul.f32 %v457, %v458
        %v460 = vsub.f32 %v446, %v459
        %v461 = vmul.f32 %v460, %v460
        %v462 = vsel %vm454, %v461, 0.0
        %463 = vadd.xlane.f32.xlu0 %v462
        %v464 = vpop.xlane.xlu0 %463
        %v465 = vmul.f32 %v464, %v458
        %v466 = vadd.f32 %v465, 1e-05
        %v467 = vrsqrt.pop %v466
        %v468 = vmul.f32 %v460, %v467
        %v469 = vlaneseq
        %v470 = vshrl.u32 %v469, 7
        %v471 = vsub.s32 0, %v470
        %v472 = vrot.slane %v447, %v471
        %v473 = vmul.f32 %v468, %v472
        %v474 = vlaneseq
        %v475 = vshrl.u32 %v474, 7
        %v476 = vsub.s32 1, %v475
        %v477 = vrot.slane %v447, %v476
        %v478 = vadd.f32 %v473, %v477
        %v479 = vpack.c.bf16 %v478, %v478
        %v480 = vld [vmem:[%s412] sm:$0xf]
        %v481 = vld [vmem:[%s412 + $0x4] sm:$0xf]
        %v482 = vld [vmem:[%s412 + $0x8] sm:$0xf]
        %v483 = vld [vmem:[%s412 + $0xc] sm:$0xf]
        %v484 = vld [vmem:[%s415] sm:$0x1]
        %v486 = vlaneseq
        %v487 = vshrl.u32 %v486, 7
        %v488 = vsub.s32 0, %v487
        %v489 = vrot.slane %v484, %v488
        %v495 = vunpack.c.l.b16 %v480
        %v496 = vunpack.c.l.b16 %v481
        %v497 = vunpack.c.l.b16 %v482
        %v498 = vunpack.c.l.b16 %v483
        %v499 = vpack.c.b16 %v496, %v495
        %v500 = vpack.c.b16 %v498, %v497
        %v504 = vsel %vm454, %v479, 0
        %506 = vmatprep.subr.bf16.mxu0 0
        %507 = vmatpush1.bf16.msra.mxu0 %v499
        %508 = vmatprep.subr.bf16.mxu0 0
        %509 = vmatpush1.bf16.msra.mxu0 %v500
        %510 = vmatprep.subr.bf16.mxu0 0
        %511 = vmatpush1.bf16.msra.mxu0 0
        %512 = vmatprep.subr.bf16.mxu0 0
        %513 = vmatpush1.bf16.msra.mxu0 0
        %514 = vmatprep.subr.bf16.mxu0 0
        %515 = vmatpush1.bf16.msra.mxu0 0
        %516 = vmatprep.subr.bf16.mxu0 0
        %517 = vmatpush1.bf16.msra.mxu0 0
        %518 = vmatprep.subr.bf16.mxu0 0
        %519 = vmatpush1.bf16.msra.mxu0 0
        %520 = vmatprep.subr.bf16.mxu0 0
        %521 = vmatpush1.bf16.msra.mxu0 0
        %522 = vmatprep.subr.bf16.mxu0 0
        %523 = vmatpush1.bf16.msra.mxu0 0
        %524 = vmatprep.subr.bf16.mxu0 0
        %525 = vmatpush1.bf16.msra.mxu0 0
        %526 = vmatprep.subr.bf16.mxu0 0
        %527 = vmatpush1.bf16.msra.mxu0 0
        %528 = vmatprep.subr.bf16.mxu0 0
        %529 = vmatpush1.bf16.msra.mxu0 0
        %530 = vmatprep.subr.bf16.mxu0 0
        %531 = vmatpush1.bf16.msra.mxu0 0
        %532 = vmatprep.subr.bf16.mxu0 0
        %533 = vmatpush1.bf16.msra.mxu0 0
        %534 = vmatprep.subr.bf16.mxu0 0
        %535 = vmatpush1.bf16.msra.mxu0 0
        %536 = vmatprep.subr.bf16.mxu0 0
        %537 = vmatpush1.bf16.msra.mxu0 0
        %538 = vmatprep.mubr.bf16.mxu0 0
        %539 = vmatmul.mubr.bf16.gmra.mrb[0].mxu0 %v504
        %v540 = vpop.f32.mrb[0].mxu0
        %v541 = vadd.f32 %v489, %v540
        %v542 = vpop.f32.mrb[0].mxu0
        %v543 = vpop.f32.mrb[0].mxu0
        %v544 = vpop.f32.mrb[0].mxu0
        %545 = vdwg.mxu0
        %v546 = vmul.f32 %v541, 0.35355338
        %v547 = vpack.c.bf16 %v546, %v546
        %v548 = vpack.c.bf16 %v541, %v541
        %550 = vrot.lane.b32.xlu0 %v548, 96
        %v551 = vpop.permute.xlu0 %550
        %vm552 = vcmask 64512
        %v554 = vsel %vm552, %v547, 0
        %v557 = vsel %vm552, %v551, 0
        %559 = vmatprep.subr.bf16.mxu0 0
        %560 = vmatpush1.bf16.xpose.msra.mxu0 %v557
        %561 = vmatprep.subr.bf16.mxu0 0
        %562 = vmatpush1.bf16.xpose.msra.mxu0 0
        %563 = vmatprep.subr.bf16.mxu0 0
        %564 = vmatpush1.bf16.xpose.msra.mxu0 0
        %565 = vmatprep.subr.bf16.mxu0 0
        %566 = vmatpush1.bf16.xpose.msra.mxu0 0
        %567 = vmatprep.subr.bf16.mxu0 0
        %568 = vmatpush1.bf16.xpose.msra.mxu0 0
        %569 = vmatprep.subr.bf16.mxu0 0
        %570 = vmatpush1.bf16.xpose.msra.mxu0 0
        %571 = vmatprep.subr.bf16.mxu0 0
        %572 = vmatpush1.bf16.xpose.msra.mxu0 0
        %573 = vmatprep.subr.bf16.mxu0 0
        %574 = vmatpush1.bf16.xpose.msra.mxu0 0
        %575 = vmatprep.subr.bf16.mxu0 0
        %576 = vmatpush1.bf16.xpose.msra.mxu0 0
        %577 = vmatprep.subr.bf16.mxu0 0
        %578 = vmatpush1.bf16.xpose.msra.mxu0 0
        %579 = vmatprep.subr.bf16.mxu0 0
        %580 = vmatpush1.bf16.xpose.msra.mxu0 0
        %581 = vmatprep.subr.bf16.mxu0 0
        %582 = vmatpush1.bf16.xpose.msra.mxu0 0
        %583 = vmatprep.subr.bf16.mxu0 0
        %584 = vmatpush1.bf16.xpose.msra.mxu0 0
        %585 = vmatprep.subr.bf16.mxu0 0
        %586 = vmatpush1.bf16.xpose.msra.mxu0 0
        %587 = vmatprep.subr.bf16.mxu0 0
        %588 = vmatpush1.bf16.xpose.msra.mxu0 0
        %589 = vmatprep.subr.bf16.mxu0 0
        %590 = vmatpush1.bf16.xpose.msra.mxu0 0
        %591 = vmatprep.mubr.bf16.mxu0 0
        %592 = vmatmul.mubr.bf16.gmra.mrb[0].mxu0 %v554
        %v593 = vpop.f32.mrb[0].mxu0
        %v594 = vadd.f32 %v453, %v593
        %v595 = vpop.f32.mrb[0].mxu0
        %v596 = vpop.f32.mrb[0].mxu0
        %v597 = vpop.f32.mrb[0].mxu0
        %598 = vdwg.mxu0
        %v599 = vsel %vm552, %v594, -inf
        %600 = vmax.xlane.f32.xlu0 %v599
        %v601 = vpop.xlane.xlu0 %600
        %v602 = vsub.f32 %v594, %v601
        %v603 = vmul.f32 %v602, 1.442695
        %v604 = vpow.pop %v603
        %v605 = vsel %vm552, %v604, 0.0
        %606 = vadd.xlane.f32.xlu0 %v605
        %v607 = vpop.xlane.xlu0 %606
        %v608 = vrcp.pop %v607
        %v609 = vpack.c.bf16 %v604, %v604
        %610 = vrot.lane.b32.xlu0 %v548, 64
        %v611 = vpop.permute.xlu0 %610
        %v613 = vsel %vm552, %v609, 0
        %vm615 = vcmask 1043456
        %v617 = vsel %vm615, %v611, 0
        %619 = vmatprep.subr.bf16.mxu0 0
        %620 = vmatpush1.bf16.msra.mxu0 %v617
        %621 = vmatprep.subr.bf16.mxu0 0
        %622 = vmatpush1.bf16.msra.mxu0 0
        %623 = vmatprep.subr.bf16.mxu0 0
        %624 = vmatpush1.bf16.msra.mxu0 0
        %625 = vmatprep.subr.bf16.mxu0 0
        %626 = vmatpush1.bf16.msra.mxu0 0
        %627 = vmatprep.subr.bf16.mxu0 0
        %628 = vmatpush1.bf16.msra.mxu0 0
        %629 = vmatprep.subr.bf16.mxu0 0
        %630 = vmatpush1.bf16.msra.mxu0 0
        %631 = vmatprep.subr.bf16.mxu0 0
        %632 = vmatpush1.bf16.msra.mxu0 0
        %633 = vmatprep.subr.bf16.mxu0 0
        %634 = vmatpush1.bf16.msra.mxu0 0
        %635 = vmatprep.subr.bf16.mxu0 0
        %636 = vmatpush1.bf16.msra.mxu0 0
        %637 = vmatprep.subr.bf16.mxu0 0
        %638 = vmatpush1.bf16.msra.mxu0 0
        %639 = vmatprep.subr.bf16.mxu0 0
        %640 = vmatpush1.bf16.msra.mxu0 0
        %641 = vmatprep.subr.bf16.mxu0 0
        %642 = vmatpush1.bf16.msra.mxu0 0
        %643 = vmatprep.subr.bf16.mxu0 0
        %644 = vmatpush1.bf16.msra.mxu0 0
        %645 = vmatprep.subr.bf16.mxu0 0
        %646 = vmatpush1.bf16.msra.mxu0 0
        %647 = vmatprep.subr.bf16.mxu0 0
        %648 = vmatpush1.bf16.msra.mxu0 0
        %649 = vmatprep.subr.bf16.mxu0 0
        %650 = vmatpush1.bf16.msra.mxu0 0
        %651 = vmatprep.mubr.bf16.mxu0 0
        %652 = vmatmul.mubr.bf16.gmra.mrb[0].mxu0 %v613
        %v653 = vpop.f32.mrb[0].mxu0
        %v654 = vadd.f32 0.0, %v653
        %v655 = vpop.f32.mrb[0].mxu0
        %v656 = vpop.f32.mrb[0].mxu0
        %v657 = vpop.f32.mrb[0].mxu0
        %658 = vdwg.mxu0
        %v659 = vmul.f32 %v654, %v608
        %v660 = vpack.c.bf16 %v659, %v659
        %662 = vrot.lane.b32.xlu0 %v547, 120
        %v663 = vpop.permute.xlu0 %662
        %664 = vrot.lane.b32.xlu0 %v548, 88
        %v665 = vpop.permute.xlu0 %664
        %v667 = vsel %vm552, %v663, 0
        %v670 = vsel %vm552, %v665, 0
        %672 = vmatprep.subr.bf16.mxu0 0
        %673 = vmatpush1.bf16.xpose.msra.mxu0 %v670
        %674 = vmatprep.subr.bf16.mxu0 0
        %675 = vmatpush1.bf16.xpose.msra.mxu0 0
        %676 = vmatprep.subr.bf16.mxu0 0
        %677 = vmatpush1.bf16.xpose.msra.mxu0 0
        %678 = vmatprep.subr.bf16.mxu0 0
        %679 = vmatpush1.bf16.xpose.msra.mxu0 0
        %680 = vmatprep.subr.bf16.mxu0 0
        %681 = vmatpush1.bf16.xpose.msra.mxu0 0
        %682 = vmatprep.subr.bf16.mxu0 0
        %683 = vmatpush1.bf16.xpose.msra.mxu0 0
        %684 = vmatprep.subr.bf16.mxu0 0
        %685 = vmatpush1.bf16.xpose.msra.mxu0 0
        %686 = vmatprep.subr.bf16.mxu0 0
        %687 = vmatpush1.bf16.xpose.msra.mxu0 0
        %688 = vmatprep.subr.bf16.mxu0 0
        %689 = vmatpush1.bf16.xpose.msra.mxu0 0
        %690 = vmatprep.subr.bf16.mxu0 0
        %691 = vmatpush1.bf16.xpose.msra.mxu0 0
        %692 = vmatprep.subr.bf16.mxu0 0
        %693 = vmatpush1.bf16.xpose.msra.mxu0 0
        %694 = vmatprep.subr.bf16.mxu0 0
        %695 = vmatpush1.bf16.xpose.msra.mxu0 0
        %696 = vmatprep.subr.bf16.mxu0 0
        %697 = vmatpush1.bf16.xpose.msra.mxu0 0
        %698 = vmatprep.subr.bf16.mxu0 0
        %699 = vmatpush1.bf16.xpose.msra.mxu0 0
        %700 = vmatprep.subr.bf16.mxu0 0
        %701 = vmatpush1.bf16.xpose.msra.mxu0 0
        %702 = vmatprep.subr.bf16.mxu0 0
        %703 = vmatpush1.bf16.xpose.msra.mxu0 0
        %704 = vmatprep.mubr.bf16.mxu0 0
        %705 = vmatmul.mubr.bf16.gmra.mrb[0].mxu0 %v667
        %v706 = vpop.f32.mrb[0].mxu0
        %v707 = vadd.f32 %v453, %v706
        %v708 = vpop.f32.mrb[0].mxu0
        %v709 = vpop.f32.mrb[0].mxu0
        %v710 = vpop.f32.mrb[0].mxu0
        %711 = vdwg.mxu0
        %v712 = vsel %vm552, %v707, -inf
        %713 = vmax.xlane.f32.xlu0 %v712
        %v714 = vpop.xlane.xlu0 %713
        %v715 = vsub.f32 %v707, %v714
        %v716 = vmul.f32 %v715, 1.442695
        %v717 = vpow.pop %v716
        %v718 = vsel %vm552, %v717, 0.0
        %719 = vadd.xlane.f32.xlu0 %v718
        %v720 = vpop.xlane.xlu0 %719
        %v721 = vrcp.pop %v720
        %v722 = vpack.c.bf16 %v717, %v717
        %723 = vrot.lane.b32.xlu0 %v548, 56
        %v724 = vpop.permute.xlu0 %723
        %v726 = vsel %vm552, %v722, 0
        %v729 = vsel %vm615, %v724, 0
        %731 = vmatprep.subr.bf16.mxu0 0
        %732 = vmatpush1.bf16.msra.mxu0 %v729
        %733 = vmatprep.subr.bf16.mxu0 0
        %734 = vmatpush1.bf16.msra.mxu0 0
        %735 = vmatprep.subr.bf16.mxu0 0
        %736 = vmatpush1.bf16.msra.mxu0 0
        %737 = vmatprep.subr.bf16.mxu0 0
        %738 = vmatpush1.bf16.msra.mxu0 0
        %739 = vmatprep.subr.bf16.mxu0 0
        %740 = vmatpush1.bf16.msra.mxu0 0
        %741 = vmatprep.subr.bf16.mxu0 0
        %742 = vmatpush1.bf16.msra.mxu0 0
        %743 = vmatprep.subr.bf16.mxu0 0
        %744 = vmatpush1.bf16.msra.mxu0 0
        %745 = vmatprep.subr.bf16.mxu0 0
        %746 = vmatpush1.bf16.msra.mxu0 0
        %747 = vmatprep.subr.bf16.mxu0 0
        %748 = vmatpush1.bf16.msra.mxu0 0
        %749 = vmatprep.subr.bf16.mxu0 0
        %750 = vmatpush1.bf16.msra.mxu0 0
        %751 = vmatprep.subr.bf16.mxu0 0
        %752 = vmatpush1.bf16.msra.mxu0 0
        %753 = vmatprep.subr.bf16.mxu0 0
        %754 = vmatpush1.bf16.msra.mxu0 0
        %755 = vmatprep.subr.bf16.mxu0 0
        %756 = vmatpush1.bf16.msra.mxu0 0
        %757 = vmatprep.subr.bf16.mxu0 0
        %758 = vmatpush1.bf16.msra.mxu0 0
        %759 = vmatprep.subr.bf16.mxu0 0
        %760 = vmatpush1.bf16.msra.mxu0 0
        %761 = vmatprep.subr.bf16.mxu0 0
        %762 = vmatpush1.bf16.msra.mxu0 0
        %763 = vmatprep.mubr.bf16.mxu0 0
        %764 = vmatmul.mubr.bf16.gmra.mrb[0].mxu0 %v726
        %v765 = vpop.f32.mrb[0].mxu0
        %v766 = vadd.f32 0.0, %v765
        %v767 = vpop.f32.mrb[0].mxu0
        %v768 = vpop.f32.mrb[0].mxu0
        %v769 = vpop.f32.mrb[0].mxu0
        %770 = vdwg.mxu0
        %v771 = vmul.f32 %v766, %v721
        %v772 = vpack.c.bf16 %v771, %v771
        %773 = vrot.lane.b32.xlu0 %v547, 112
        %v774 = vpop.permute.xlu0 %773
        %775 = vrot.lane.b32.xlu0 %v548, 80
        %v776 = vpop.permute.xlu0 %775
        %v778 = vsel %vm552, %v774, 0
        %v781 = vsel %vm552, %v776, 0
        %783 = vmatprep.subr.bf16.mxu0 0
        %784 = vmatpush1.bf16.xpose.msra.mxu0 %v781
        %785 = vmatprep.subr.bf16.mxu0 0
        %786 = vmatpush1.bf16.xpose.msra.mxu0 0
        %787 = vmatprep.subr.bf16.mxu0 0
        %788 = vmatpush1.bf16.xpose.msra.mxu0 0
        %789 = vmatprep.subr.bf16.mxu0 0
        %790 = vmatpush1.bf16.xpose.msra.mxu0 0
        %791 = vmatprep.subr.bf16.mxu0 0
        %792 = vmatpush1.bf16.xpose.msra.mxu0 0
        %793 = vmatprep.subr.bf16.mxu0 0
        %794 = vmatpush1.bf16.xpose.msra.mxu0 0
        %795 = vmatprep.subr.bf16.mxu0 0
        %796 = vmatpush1.bf16.xpose.msra.mxu0 0
        %797 = vmatprep.subr.bf16.mxu0 0
        %798 = vmatpush1.bf16.xpose.msra.mxu0 0
        %799 = vmatprep.subr.bf16.mxu0 0
        %800 = vmatpush1.bf16.xpose.msra.mxu0 0
        %801 = vmatprep.subr.bf16.mxu0 0
        %802 = vmatpush1.bf16.xpose.msra.mxu0 0
        %803 = vmatprep.subr.bf16.mxu0 0
        %804 = vmatpush1.bf16.xpose.msra.mxu0 0
        %805 = vmatprep.subr.bf16.mxu0 0
        %806 = vmatpush1.bf16.xpose.msra.mxu0 0
        %807 = vmatprep.subr.bf16.mxu0 0
        %808 = vmatpush1.bf16.xpose.msra.mxu0 0
        %809 = vmatprep.subr.bf16.mxu0 0
        %810 = vmatpush1.bf16.xpose.msra.mxu0 0
        %811 = vmatprep.subr.bf16.mxu0 0
        %812 = vmatpush1.bf16.xpose.msra.mxu0 0
        %813 = vmatprep.subr.bf16.mxu0 0
        %814 = vmatpush1.bf16.xpose.msra.mxu0 0
        %815 = vmatprep.mubr.bf16.mxu0 0
        %816 = vmatmul.mubr.bf16.gmra.mrb[0].mxu0 %v778
        %v817 = vpop.f32.mrb[0].mxu0
        %v818 = vadd.f32 %v453, %v817
        %v819 = vpop.f32.mrb[0].mxu0
        %v820 = vpop.f32.mrb[0].mxu0
        %v821 = vpop.f32.mrb[0].mxu0
        %822 = vdwg.mxu0
        %v823 = vsel %vm552, %v818, -inf
        %824 = vmax.xlane.f32.xlu0 %v823
        %v825 = vpop.xlane.xlu0 %824
        %v826 = vsub.f32 %v818, %v825
        %v827 = vmul.f32 %v826, 1.442695
        %v828 = vpow.pop %v827
        %v829 = vsel %vm552, %v828, 0.0
        %830 = vadd.xlane.f32.xlu0 %v829
        %v831 = vpop.xlane.xlu0 %830
        %v832 = vrcp.pop %v831
        %v833 = vpack.c.bf16 %v828, %v828
        %834 = vrot.lane.b32.xlu0 %v548, 48
        %v835 = vpop.permute.xlu0 %834
        %v837 = vsel %vm552, %v833, 0
        %v840 = vsel %vm615, %v835, 0
        %842 = vmatprep.subr.bf16.mxu0 0
        %843 = vmatpush1.bf16.msra.mxu0 %v840
        %844 = vmatprep.subr.bf16.mxu0 0
        %845 = vmatpush1.bf16.msra.mxu0 0
        %846 = vmatprep.subr.bf16.mxu0 0
        %847 = vmatpush1.bf16.msra.mxu0 0
        %848 = vmatprep.subr.bf16.mxu0 0
        %849 = vmatpush1.bf16.msra.mxu0 0
        %850 = vmatprep.subr.bf16.mxu0 0
        %851 = vmatpush1.bf16.msra.mxu0 0
        %852 = vmatprep.subr.bf16.mxu0 0
        %853 = vmatpush1.bf16.msra.mxu0 0
        %854 = vmatprep.subr.bf16.mxu0 0
        %855 = vmatpush1.bf16.msra.mxu0 0
        %856 = vmatprep.subr.bf16.mxu0 0
        %857 = vmatpush1.bf16.msra.mxu0 0
        %858 = vmatprep.subr.bf16.mxu0 0
        %859 = vmatpush1.bf16.msra.mxu0 0
        %860 = vmatprep.subr.bf16.mxu0 0
        %861 = vmatpush1.bf16.msra.mxu0 0
        %862 = vmatprep.subr.bf16.mxu0 0
        %863 = vmatpush1.bf16.msra.mxu0 0
        %864 = vmatprep.subr.bf16.mxu0 0
        %865 = vmatpush1.bf16.msra.mxu0 0
        %866 = vmatprep.subr.bf16.mxu0 0
        %867 = vmatpush1.bf16.msra.mxu0 0
        %868 = vmatprep.subr.bf16.mxu0 0
        %869 = vmatpush1.bf16.msra.mxu0 0
        %870 = vmatprep.subr.bf16.mxu0 0
        %871 = vmatpush1.bf16.msra.mxu0 0
        %872 = vmatprep.subr.bf16.mxu0 0
        %873 = vmatpush1.bf16.msra.mxu0 0
        %874 = vmatprep.mubr.bf16.mxu0 0
        %875 = vmatmul.mubr.bf16.gmra.mrb[0].mxu0 %v837
        %v876 = vpop.f32.mrb[0].mxu0
        %v877 = vadd.f32 0.0, %v876
        %v878 = vpop.f32.mrb[0].mxu0
        %v879 = vpop.f32.mrb[0].mxu0
        %v880 = vpop.f32.mrb[0].mxu0
        %881 = vdwg.mxu0
        %v882 = vmul.f32 %v877, %v832
        %v883 = vpack.c.bf16 %v882, %v882
        %884 = vrot.lane.b32.xlu0 %v547, 104
        %v885 = vpop.permute.xlu0 %884
        %886 = vrot.lane.b32.xlu0 %v548, 72
        %v887 = vpop.permute.xlu0 %886
        %v889 = vsel %vm552, %v885, 0
        %v892 = vsel %vm552, %v887, 0
        %894 = vmatprep.subr.bf16.mxu0 0
        %895 = vmatpush1.bf16.xpose.msra.mxu0 %v892
        %896 = vmatprep.subr.bf16.mxu0 0
        %897 = vmatpush1.bf16.xpose.msra.mxu0 0
        %898 = vmatprep.subr.bf16.mxu0 0
        %899 = vmatpush1.bf16.xpose.msra.mxu0 0
        %900 = vmatprep.subr.bf16.mxu0 0
        %901 = vmatpush1.bf16.xpose.msra.mxu0 0
        %902 = vmatprep.subr.bf16.mxu0 0
        %903 = vmatpush1.bf16.xpose.msra.mxu0 0
        %904 = vmatprep.subr.bf16.mxu0 0
        %905 = vmatpush1.bf16.xpose.msra.mxu0 0
        %906 = vmatprep.subr.bf16.mxu0 0
        %907 = vmatpush1.bf16.xpose.msra.mxu0 0
        %908 = vmatprep.subr.bf16.mxu0 0
        %909 = vmatpush1.bf16.xpose.msra.mxu0 0
        %910 = vmatprep.subr.bf16.mxu0 0
        %911 = vmatpush1.bf16.xpose.msra.mxu0 0
        %912 = vmatprep.subr.bf16.mxu0 0
        %913 = vmatpush1.bf16.xpose.msra.mxu0 0
        %914 = vmatprep.subr.bf16.mxu0 0
        %915 = vmatpush1.bf16.xpose.msra.mxu0 0
        %916 = vmatprep.subr.bf16.mxu0 0
        %917 = vmatpush1.bf16.xpose.msra.mxu0 0
        %918 = vmatprep.subr.bf16.mxu0 0
        %919 = vmatpush1.bf16.xpose.msra.mxu0 0
        %920 = vmatprep.subr.bf16.mxu0 0
        %921 = vmatpush1.bf16.xpose.msra.mxu0 0
        %922 = vmatprep.subr.bf16.mxu0 0
        %923 = vmatpush1.bf16.xpose.msra.mxu0 0
        %924 = vmatprep.subr.bf16.mxu0 0
        %925 = vmatpush1.bf16.xpose.msra.mxu0 0
        %926 = vmatprep.mubr.bf16.mxu0 0
        %927 = vmatmul.mubr.bf16.gmra.mrb[0].mxu0 %v889
        %v928 = vpop.f32.mrb[0].mxu0
        %v929 = vadd.f32 %v453, %v928
        %v930 = vpop.f32.mrb[0].mxu0
        %v931 = vpop.f32.mrb[0].mxu0
        %v932 = vpop.f32.mrb[0].mxu0
        %933 = vdwg.mxu0
        %v934 = vsel %vm552, %v929, -inf
        %935 = vmax.xlane.f32.xlu0 %v934
        %v936 = vpop.xlane.xlu0 %935
        %v937 = vsub.f32 %v929, %v936
        %v938 = vmul.f32 %v937, 1.442695
        %v939 = vpow.pop %v938
        %v940 = vsel %vm552, %v939, 0.0
        %941 = vadd.xlane.f32.xlu0 %v940
        %v942 = vpop.xlane.xlu0 %941
        %v943 = vrcp.pop %v942
        %v944 = vpack.c.bf16 %v939, %v939
        %945 = vrot.lane.b32.xlu0 %v548, 40
        %v946 = vpop.permute.xlu0 %945
        %v948 = vsel %vm552, %v944, 0
        %v951 = vsel %vm615, %v946, 0
        %953 = vmatprep.subr.bf16.mxu0 0
        %954 = vmatpush1.bf16.msra.mxu0 %v951
        %955 = vmatprep.subr.bf16.mxu0 0
        %956 = vmatpush1.bf16.msra.mxu0 0
        %957 = vmatprep.subr.bf16.mxu0 0
        %958 = vmatpush1.bf16.msra.mxu0 0
        %959 = vmatprep.subr.bf16.mxu0 0
        %960 = vmatpush1.bf16.msra.mxu0 0
        %961 = vmatprep.subr.bf16.mxu0 0
        %962 = vmatpush1.bf16.msra.mxu0 0
        %963 = vmatprep.subr.bf16.mxu0 0
        %964 = vmatpush1.bf16.msra.mxu0 0
        %965 = vmatprep.subr.bf16.mxu0 0
        %966 = vmatpush1.bf16.msra.mxu0 0
        %967 = vmatprep.subr.bf16.mxu0 0
        %968 = vmatpush1.bf16.msra.mxu0 0
        %969 = vmatprep.subr.bf16.mxu0 0
        %970 = vmatpush1.bf16.msra.mxu0 0
        %971 = vmatprep.subr.bf16.mxu0 0
        %972 = vmatpush1.bf16.msra.mxu0 0
        %973 = vmatprep.subr.bf16.mxu0 0
        %974 = vmatpush1.bf16.msra.mxu0 0
        %975 = vmatprep.subr.bf16.mxu0 0
        %976 = vmatpush1.bf16.msra.mxu0 0
        %977 = vmatprep.subr.bf16.mxu0 0
        %978 = vmatpush1.bf16.msra.mxu0 0
        %979 = vmatprep.subr.bf16.mxu0 0
        %980 = vmatpush1.bf16.msra.mxu0 0
        %981 = vmatprep.subr.bf16.mxu0 0
        %982 = vmatpush1.bf16.msra.mxu0 0
        %983 = vmatprep.subr.bf16.mxu0 0
        %984 = vmatpush1.bf16.msra.mxu0 0
        %985 = vmatprep.mubr.bf16.mxu0 0
        %986 = vmatmul.mubr.bf16.gmra.mrb[0].mxu0 %v948
        %v987 = vpop.f32.mrb[0].mxu0
        %v988 = vadd.f32 0.0, %v987
        %v989 = vpop.f32.mrb[0].mxu0
        %v990 = vpop.f32.mrb[0].mxu0
        %v991 = vpop.f32.mrb[0].mxu0
        %992 = vdwg.mxu0
        %v993 = vmul.f32 %v988, %v943
        %v994 = vpack.c.bf16 %v993, %v993
        %996 = vrot.lane.b32.xlu0 %v772, 8
        %v997 = vpop.permute.xlu0 %996
        %999 = vrot.lane.b32.xlu0 %v883, 16
        %v1000 = vpop.permute.xlu0 %999
        %1002 = vrot.lane.b32.xlu0 %v994, 24
        %v1003 = vpop.permute.xlu0 %1002
        %v1006 = vsel %vm552, %v660, %v997
        %vm1007 = vcmask 130048
        %v1009 = vsel %vm1007, %v1006, %v1000
        %vm1010 = vcmask 195584
        %v1012 = vsel %vm1010, %v1009, %v1003
        %v1013 = vld [vmem:[%s420] sm:$0xf]
        %v1014 = vld [vmem:[%s420 + $0x4] sm:$0xf]
        %v1015 = vld [vmem:[%s420 + $0x8] sm:$0xf]
        %v1016 = vld [vmem:[%s420 + $0xc] sm:$0xf]
        %v1017 = vlaneseq
        %v1018 = vshrl.u32 %v1017, 7
        %v1019 = vsub.s32 4, %v1018
        %v1020 = vrot.slane %v447, %v1019
        %v1025 = vunpack.c.l.b16 %v1013
        %v1026 = vunpack.c.l.b16 %v1014
        %v1027 = vunpack.c.l.b16 %v1015
        %v1028 = vunpack.c.l.b16 %v1016
        %v1029 = vpack.c.b16 %v1026, %v1025
        %v1030 = vpack.c.b16 %v1028, %v1027
        %v1033 = vsel %vm454, %v1012, 0
        %1035 = vmatprep.subr.bf16.mxu0 0
        %1036 = vmatpush1.bf16.msra.mxu0 %v1029
        %1037 = vmatprep.subr.bf16.mxu0 0
        %1038 = vmatpush1.bf16.msra.mxu0 %v1030
        %1039 = vmatprep.subr.bf16.mxu0 0
        %1040 = vmatpush1.bf16.msra.mxu0 0
        %1041 = vmatprep.subr.bf16.mxu0 0
        %1042 = vmatpush1.bf16.msra.mxu0 0
        %1043 = vmatprep.subr.bf16.mxu0 0
        %1044 = vmatpush1.bf16.msra.mxu0 0
        %1045 = vmatprep.subr.bf16.mxu0 0
        %1046 = vmatpush1.bf16.msra.mxu0 0
        %1047 = vmatprep.subr.bf16.mxu0 0
        %1048 = vmatpush1.bf16.msra.mxu0 0
        %1049 = vmatprep.subr.bf16.mxu0 0
        %1050 = vmatpush1.bf16.msra.mxu0 0
        %1051 = vmatprep.subr.bf16.mxu0 0
        %1052 = vmatpush1.bf16.msra.mxu0 0
        %1053 = vmatprep.subr.bf16.mxu0 0
        %1054 = vmatpush1.bf16.msra.mxu0 0
        %1055 = vmatprep.subr.bf16.mxu0 0
        %1056 = vmatpush1.bf16.msra.mxu0 0
        %1057 = vmatprep.subr.bf16.mxu0 0
        %1058 = vmatpush1.bf16.msra.mxu0 0
        %1059 = vmatprep.subr.bf16.mxu0 0
        %1060 = vmatpush1.bf16.msra.mxu0 0
        %1061 = vmatprep.subr.bf16.mxu0 0
        %1062 = vmatpush1.bf16.msra.mxu0 0
        %1063 = vmatprep.subr.bf16.mxu0 0
        %1064 = vmatpush1.bf16.msra.mxu0 0
        %1065 = vmatprep.subr.bf16.mxu0 0
        %1066 = vmatpush1.bf16.msra.mxu0 0
        %1067 = vmatprep.mubr.bf16.mxu0 0
        %1068 = vmatmul.mubr.bf16.gmra.mrb[0].mxu0 %v1033
        %v1069 = vpop.f32.mrb[0].mxu0
        %v1070 = vadd.f32 %v1020, %v1069
        %v1071 = vpop.f32.mrb[0].mxu0
        %v1072 = vpop.f32.mrb[0].mxu0
        %v1073 = vpop.f32.mrb[0].mxu0
        %1074 = vdwg.mxu0
        %v1075 = vadd.f32 %v446, %v1070
        %v1076 = vsel %vm454, %v1075, 0.0
        %1077 = vadd.xlane.f32.xlu0 %v1076
        %v1078 = vpop.xlane.xlu0 %1077
        %v1079 = vmul.f32 %v1078, %v458
        %v1080 = vsub.f32 %v1075, %v1079
        %v1081 = vmul.f32 %v1080, %v1080
        %v1082 = vsel %vm454, %v1081, 0.0
        %1083 = vadd.xlane.f32.xlu0 %v1082
        %v1084 = vpop.xlane.xlu0 %1083
        %v1085 = vmul.f32 %v1084, %v458
        %v1086 = vadd.f32 %v1085, 1e-05
        %v1087 = vrsqrt.pop %v1086
        %v1088 = vmul.f32 %v1080, %v1087
        %v1089 = vlaneseq
        %v1090 = vshrl.u32 %v1089, 7
        %v1091 = vsub.s32 2, %v1090
        %v1092 = vrot.slane %v447, %v1091
        %v1093 = vmul.f32 %v1088, %v1092
        %v1094 = vlaneseq
        %v1095 = vshrl.u32 %v1094, 7
        %v1096 = vsub.s32 3, %v1095
        %v1097 = vrot.slane %v447, %v1096
        %v1098 = vadd.f32 %v1093, %v1097
        %v1099 = vpack.c.bf16 %v1098, %v1098
        %v1100 = vld [vmem:[%s425] sm:$0xf]
        %v1101 = vld [vmem:[%s425 + $0x4] sm:$0xf]
        %v1102 = vld [vmem:[%s425 + $0x8] sm:$0xf]
        %v1103 = vld [vmem:[%s425 + $0xc] sm:$0xf]
        %v1104 = vld [vmem:[%s428] sm:$0x1]
        %v1106 = vlaneseq
        %v1107 = vshrl.u32 %v1106, 7
        %v1108 = vsub.s32 0, %v1107
        %v1109 = vrot.slane %v1104, %v1108
        %v1115 = vunpack.c.l.b16 %v1100
        %v1116 = vunpack.c.l.b16 %v1101
        %v1117 = vunpack.c.l.b16 %v1102
        %v1118 = vunpack.c.l.b16 %v1103
        %v1119 = vpack.c.b16 %v1116, %v1115
        %v1120 = vpack.c.b16 %v1118, %v1117
        %v1124 = vsel %vm454, %v1099, 0
        %1126 = vmatprep.subr.bf16.mxu0 0
        %1127 = vmatpush1.bf16.msra.mxu0 %v1119
        %1128 = vmatprep.subr.bf16.mxu0 0
        %1129 = vmatpush1.bf16.msra.mxu0 %v1120
        %1130 = vmatprep.subr.bf16.mxu0 0
        %1131 = vmatpush1.bf16.msra.mxu0 0
        %1132 = vmatprep.subr.bf16.mxu0 0
        %1133 = vmatpush1.bf16.msra.mxu0 0
        %1134 = vmatprep.subr.bf16.mxu0 0
        %1135 = vmatpush1.bf16.msra.mxu0 0
        %1136 = vmatprep.subr.bf16.mxu0 0
        %1137 = vmatpush1.bf16.msra.mxu0 0
        %1138 = vmatprep.subr.bf16.mxu0 0
        %1139 = vmatpush1.bf16.msra.mxu0 0
        %1140 = vmatprep.subr.bf16.mxu0 0
        %1141 = vmatpush1.bf16.msra.mxu0 0
        %1142 = vmatprep.subr.bf16.mxu0 0
        %1143 = vmatpush1.bf16.msra.mxu0 0
        %1144 = vmatprep.subr.bf16.mxu0 0
        %1145 = vmatpush1.bf16.msra.mxu0 0
        %1146 = vmatprep.subr.bf16.mxu0 0
        %1147 = vmatpush1.bf16.msra.mxu0 0
        %1148 = vmatprep.subr.bf16.mxu0 0
        %1149 = vmatpush1.bf16.msra.mxu0 0
        %1150 = vmatprep.subr.bf16.mxu0 0
        %1151 = vmatpush1.bf16.msra.mxu0 0
        %1152 = vmatprep.subr.bf16.mxu0 0
        %1153 = vmatpush1.bf16.msra.mxu0 0
        %1154 = vmatprep.subr.bf16.mxu0 0
        %1155 = vmatpush1.bf16.msra.mxu0 0
        %1156 = vmatprep.subr.bf16.mxu0 0
        %1157 = vmatpush1.bf16.msra.mxu0 0
        %1158 = vmatprep.mubr.bf16.mxu0 0
        %1159 = vmatmul.mubr.bf16.gmra.mrb[0].mxu0 %v1124
        %v1160 = vpop.f32.mrb[0].mxu0
        %v1161 = vadd.f32 %v1109, %v1160
        %v1162 = vpop.f32.mrb[0].mxu0
        %v1163 = vpop.f32.mrb[0].mxu0
        %v1164 = vpop.f32.mrb[0].mxu0
        %1165 = vdwg.mxu0
        %v1166 = vmax.f32 %v1161, 0.0
        %v1167 = vpack.c.bf16 %v1166, %v1166
        %v1168 = vld [vmem:[%s433] sm:$0xf]
        %v1169 = vld [vmem:[%s433 + $0x4] sm:$0xf]
        %v1170 = vld [vmem:[%s433 + $0x8] sm:$0xf]
        %v1171 = vld [vmem:[%s433 + $0xc] sm:$0xf]
        %v1172 = vld [vmem:[%s433 + $0x10] sm:$0xf]
        %v1173 = vld [vmem:[%s433 + $0x14] sm:$0xf]
        %v1174 = vld [vmem:[%s433 + $0x18] sm:$0xf]
        %v1175 = vld [vmem:[%s433 + $0x1c] sm:$0xf]
        %v1176 = vld [vmem:[%s433 + $0x20] sm:$0xf]
        %v1177 = vld [vmem:[%s433 + $0x24] sm:$0xf]
        %v1178 = vld [vmem:[%s433 + $0x28] sm:$0xf]
        %v1179 = vld [vmem:[%s433 + $0x2c] sm:$0xf]
        %v1180 = vld [vmem:[%s433 + $0x30] sm:$0xf]
        %v1181 = vld [vmem:[%s433 + $0x34] sm:$0xf]
        %v1182 = vld [vmem:[%s433 + $0x38] sm:$0xf]
        %v1183 = vld [vmem:[%s433 + $0x3c] sm:$0xf]
        %v1184 = vlaneseq
        %v1185 = vshrl.u32 %v1184, 7
        %v1186 = vsub.s32 5, %v1185
        %v1187 = vrot.slane %v447, %v1186
        %v1204 = vunpack.c.l.b16 %v1168
        %v1205 = vunpack.c.l.b16 %v1169
        %v1206 = vunpack.c.l.b16 %v1170
        %v1207 = vunpack.c.l.b16 %v1171
        %v1208 = vunpack.c.l.b16 %v1172
        %v1209 = vunpack.c.l.b16 %v1173
        %v1210 = vunpack.c.l.b16 %v1174
        %v1211 = vunpack.c.l.b16 %v1175
        %v1212 = vunpack.c.l.b16 %v1176
        %v1213 = vunpack.c.l.b16 %v1177
        %v1214 = vunpack.c.l.b16 %v1178
        %v1215 = vunpack.c.l.b16 %v1179
        %v1216 = vunpack.c.l.b16 %v1180
        %v1217 = vunpack.c.l.b16 %v1181
        %v1218 = vunpack.c.l.b16 %v1182
        %v1219 = vunpack.c.l.b16 %v1183
        %v1220 = vpack.c.b16 %v1205, %v1204
        %v1221 = vpack.c.b16 %v1207, %v1206
        %v1222 = vpack.c.b16 %v1209, %v1208
        %v1223 = vpack.c.b16 %v1211, %v1210
        %v1224 = vpack.c.b16 %v1213, %v1212
        %v1225 = vpack.c.b16 %v1215, %v1214
        %v1226 = vpack.c.b16 %v1217, %v1216
        %v1227 = vpack.c.b16 %v1219, %v1218
        %1236 = vmatprep.subr.bf16.mxu0 0
        %1237 = vmatpush1.bf16.msra.mxu0 %v1220
        %1238 = vmatprep.subr.bf16.mxu0 0
        %1239 = vmatpush1.bf16.msra.mxu0 %v1221
        %1240 = vmatprep.subr.bf16.mxu0 0
        %1241 = vmatpush1.bf16.msra.mxu0 %v1222
        %1242 = vmatprep.subr.bf16.mxu0 0
        %1243 = vmatpush1.bf16.msra.mxu0 %v1223
        %1244 = vmatprep.subr.bf16.mxu0 0
        %1245 = vmatpush1.bf16.msra.mxu0 %v1224
        %1246 = vmatprep.subr.bf16.mxu0 0
        %1247 = vmatpush1.bf16.msra.mxu0 %v1225
        %1248 = vmatprep.subr.bf16.mxu0 0
        %1249 = vmatpush1.bf16.msra.mxu0 %v1226
        %1250 = vmatprep.subr.bf16.mxu0 0
        %1251 = vmatpush1.bf16.msra.mxu0 %v1227
        %1252 = vmatprep.subr.bf16.mxu0 0
        %1253 = vmatpush1.bf16.msra.mxu0 0
        %1254 = vmatprep.subr.bf16.mxu0 0
        %1255 = vmatpush1.bf16.msra.mxu0 0
        %1256 = vmatprep.subr.bf16.mxu0 0
        %1257 = vmatpush1.bf16.msra.mxu0 0
        %1258 = vmatprep.subr.bf16.mxu0 0
        %1259 = vmatpush1.bf16.msra.mxu0 0
        %1260 = vmatprep.subr.bf16.mxu0 0
        %1261 = vmatpush1.bf16.msra.mxu0 0
        %1262 = vmatprep.subr.bf16.mxu0 0
        %1263 = vmatpush1.bf16.msra.mxu0 0
        %1264 = vmatprep.subr.bf16.mxu0 0
        %1265 = vmatpush1.bf16.msra.mxu0 0
        %1266 = vmatprep.subr.bf16.mxu0 0
        %1267 = vmatpush1.bf16.msra.mxu0 0
        %1268 = vmatprep.mubr.bf16.mxu0 0
        %1269 = vmatmul.mubr.bf16.gmra.mrb[0].mxu0 %v1167
        %v1270 = vpop.f32.mrb[0].mxu0
        %v1271 = vadd.f32 %v1187, %v1270
        %v1272 = vpop.f32.mrb[0].mxu0
        %v1273 = vpop.f32.mrb[0].mxu0
        %v1274 = vpop.f32.mrb[0].mxu0
        %1275 = vdwg.mxu0
        %v1276 = vadd.f32 %v1075, %v1271
        %1277 = vst.msk [vmem:[%s403] sm:$0xff] %vm454, %v1276
        %s1278 = sand.u32 %s250, 1
        %s1279 = scalar_lea.sflag [#allocation3], %s1278
        %s1280 = sand.u32 %s250, 1
        %s1281 = smul.addr %s1280, 8
        %s1282 = scalar_lea.vmem [#allocation2], %s1281
        // Predicated region
        $region57: #{tpu_custom_call.1} parent=51 // pred_check
          %p1283 = pneg %p260
        $region58: #{tpu_custom_call.1} parent=51 // pred_check_branch
          %1285 = sbr.rel (%p1283) target = $region60
        $region59: #{tpu_custom_call.1} parent=51 // pred_region
          %s1287 = ssub.s32 128, 128
          %1288 = vsyncadd %s1279, %s1287
          %s1289 = smul.addr %s26, 128
          %s1290 = scalar_lea.hbm %s8, %s1289
          %s1292 = sshll.u32 %s1282, 4
          %s1293 = int_to_ptr.vmem [resolvable:$true] %s1292
          %1295 = dma.vmem_to_hbm [thread:$0]  %s1293, 128, %s1290, %s1279
        $region60: #{tpu_custom_call.1} parent=51 // pred_fallthru
          _
      $region52: #{tpu_custom_call.1} parent=5 // pred_fallthru
        _
      %p1296 = scmp.le.s32.totalorder 2, %s17
      // Predicated region
      $region61: #{tpu_custom_call.1} parent=5 // pred_check
        %p1297 = pneg %p1296
      $region62: #{tpu_custom_call.1} parent=5 // pred_check_branch
        %1299 = sbr.rel (%p1297) target = $region64
      $region63: #{tpu_custom_call.1} parent=5 // pred_region
        %s1300 = ssub.s32 %s17, 2
        // Predicated region
        $region65: #{tpu_custom_call.1} parent=63 // pred_check
          %p1301 = pneg %p266
        $region66: #{tpu_custom_call.1} parent=63 // pred_check_branch
          %1303 = sbr.rel (%p1301) target = $region68
        $region67: #{tpu_custom_call.1} parent=63 // pred_region
          %s1304 = sand.u32 %s251, 1
          %s1305 = scalar_lea.sflag [#allocation3], %s1304
          %s1306 = sand.u32 %s251, 1
          %s1307 = smul.addr %s1306, 8
          %s1308 = scalar_lea.vmem [#allocation2], %s1307
          %1309 = dma.done %s1305, 128
        $region68: #{tpu_custom_call.1} parent=63 // pred_fallthru
          _
      $region64: #{tpu_custom_call.1} parent=5 // pred_fallthru
        _
    $region6: #{tpu_custom_call.1} parent=1 // loop_footer
      %s21 = sadd.s32 1, %s17
    $region7: #{tpu_custom_call.1} parent=1 // loop_footer_branch
      %16 = sbr.rel target = $region3
    $region8: #{tpu_custom_call.1} parent=1 // loop_exit
      _
    %1310 = vsyncpa [#allocation3], 1
    %s1311 = scalar_lea.sflag [#allocation3], 1
    %1312 = vsyncpa %s1311, 1

</llo_original>
